<compile_context>
chip_gen: v5e
topology: v5e:2x2
jax: 0.10.0
libtpu: 0.0.40
codegen_flags: <defaults>
</compile_context>

<pallas_src>
import functools

import jax
import jax.numpy as jnp
from jax.experimental import pallas as pl
from jax.experimental.pallas import tpu as pltpu  # noqa: F401  (TPU backend)


def _full_spec(shape):
    """Whole-array block for grid=(1,) (exempt from (8,128) divisibility)."""
    nd = len(shape)
    return pl.BlockSpec(tuple(shape), lambda i, _nd=nd: (0,) * _nd)


# ----------------------------------------------------------------------------
# Kernel 1: fused encoder + masked mean pooling + 3-MLP "cat" head
# ----------------------------------------------------------------------------
def _mega_kernel(x_ref, maskbd_ref, bias_ref,
                 wqkv_ref, bqkv_ref, wo_ref, bo_ref,
                 w1_ref, b1_ref, w2_ref, b2_ref, w3_ref, b3_ref,
                 wo1_ref, wo2_ref, wo3_ref, bout_ref,
                 o_ref, *, num_layers, num_heads, d_model, chunk, groups, scale):
    D, H, C, G = d_model, num_heads, chunk, groups
    Dh = D // H
    f32 = jnp.float32

    x2 = x_ref[...]                        # (B*L, D)  -- stays in VMEM/vregs
    bias = bias_ref[...]                   # (G, 1, C) key-padding bias

    # ---- encoder layers: fused QKV proj + chunked MHA + out proj + residual
    for lp in range(num_layers):
        wqkv = wqkv_ref[lp]                # (D, 3D)  columns = [q | k | v]
        bqkv = bqkv_ref[lp]                # (1, 3D)
        bo = bo_ref[lp]                    # (1, D)

        qkv = jnp.dot(x2, wqkv, preferred_element_type=f32) + bqkv   # (B*L, 3D)

        out2 = jnp.zeros_like(x2)
        for h in range(H):                 # tiny H -> unrolled at trace time
            q = (qkv[:, h * Dh:(h + 1) * Dh] * scale).reshape(G, C, Dh)
            k = qkv[:, D + h * Dh:D + (h + 1) * Dh].reshape(G, C, Dh)
            v = qkv[:, 2 * D + h * Dh:2 * D + (h + 1) * Dh].reshape(G, C, Dh)

            s = jnp.einsum('gqd,gkd->gqk', q, k,
                           preferred_element_type=f32) + bias        # (G,C,C)
            m = jnp.max(s, axis=-1, keepdims=True)
            p = jnp.exp(s - m)
            p = p * pl.reciprocal(jnp.sum(p, axis=-1, keepdims=True),
                                  approx=True)
            oh = jnp.einsum('gqk,gkd->gqd', p, v,
                            preferred_element_type=f32)              # (G,C,Dh)
            # per-head block of the output projection: wo_ref is (NL, H, Dh, D)
            out2 = out2 + jnp.dot(oh.reshape(-1, Dh), wo_ref[lp, h],
                                  preferred_element_type=f32)
        x2 = x2 + out2 + bo                # residual + output-proj bias

    # ---- masked mean pooling via pre-normalized block-diagonal mask matmul
    pooled = jnp.dot(maskbd_ref[...], x2, preferred_element_type=f32)  # (B, D)

    # ---- 3-layer MLP head; "cat" realized by splitting w_out per branch
    h1 = jnp.maximum(jnp.dot(pooled, w1_ref[...], preferred_element_type=f32)
                     + b1_ref[...], 0.0)
    h2 = jnp.maximum(jnp.dot(h1, w2_ref[...], preferred_element_type=f32)
                     + b2_ref[...], 0.0)
    h3 = jnp.maximum(jnp.dot(h2, w3_ref[...], preferred_element_type=f32)
                     + b3_ref[...], 0.0)
    out = (jnp.dot(h1, wo1_ref[...], preferred_element_type=f32)
           + jnp.dot(h2, wo2_ref[...], preferred_element_type=f32)
           + jnp.dot(h3, wo3_ref[...], preferred_element_type=f32)
           + bout_ref[...])
    o_ref[...] = out                       # (B, 1)


def mega_forward(params, ids, attention_mask, cfg):
    """Reconstructed HyenaRegressor_MLP_cat_Reduced forward.  Returns [B]."""
    B, L = ids.shape
    D, H = cfg["d_model"], cfg["num_heads"]
    C, NL = cfg["chunk_size"], cfg["num_layers"]
    NC = L // C
    Dh = D // H
    G = B * NC

    mask_f = attention_mask.astype(jnp.float32)                      # (B, L)

    # token + positional embedding (gather; plain XLA)
    x = params["tok_emb"][ids] + params["pos_emb"][:L][None, :, :]   # (B, L, D)
    x2 = x.reshape(B * L, D)

    # key-padding bias per (batch, chunk): (G, 1, C)
    bias = ((1.0 - mask_f) * -1e9).reshape(G, 1, C)

    # pre-normalized block-diagonal pooling matrix: pooled = mask_bd @ x2
    counts = jnp.maximum(mask_f.sum(axis=1, keepdims=True), 1.0)     # (B, 1)
    mask_n = mask_f / counts
    mask_bd = (jnp.eye(B, dtype=jnp.float32)[:, :, None]
               * mask_n[None, :, :]).reshape(B, B * L)               # (B, B*L)

    p = params
    args = (x2, mask_bd, bias,
            p["wqkv"], p["bqkv"], p["wo"], p["bo"],
            p["w1"], p["b1"], p["w2"], p["b2"], p["w3"], p["b3"],
            p["wo1"], p["wo2"], p["wo3"], p["b_out"])

    out = pl.pallas_call(
        functools.partial(_mega_kernel, num_layers=NL, num_heads=H,
                          d_model=D, chunk=C, groups=G,
                          scale=1.0 / (Dh ** 0.5)),
        grid=(1,),
        out_shape=jax.ShapeDtypeStruct((B, 1), jnp.float32),
        in_specs=[_full_spec(a.shape) for a in args],
        out_specs=_full_spec((B, 1)),
    )(*args)
    return out.reshape(B)


# ----------------------------------------------------------------------------
# Kernel 2: fused 2-layer mean-aggregation GraphSAGE + MLP head
# ----------------------------------------------------------------------------
def _sage_kernel(a_ref, x_ref,
                 ws1_ref, wn1_ref, bc1_ref, ws2_ref, wn2_ref, bc2_ref,
                 w1_ref, b1_ref, w2_ref, b2_ref, wo_ref, bo_ref,
                 o_ref):
    f32 = jnp.float32
    a = a_ref[...]                         # (N, N) row-normalized adjacency
    h = x_ref[...]                         # (N, Fin)

    # SAGE conv 1 (A@h fused; `neigh` never hits HBM)
    neigh = jnp.dot(a, h, preferred_element_type=f32)
    h = jnp.maximum(jnp.dot(h, ws1_ref[...], preferred_element_type=f32)
                    + jnp.dot(neigh, wn1_ref[...], preferred_element_type=f32)
                    + bc1_ref[...], 0.0)
    # SAGE conv 2
    neigh = jnp.dot(a, h, preferred_element_type=f32)
    h = jnp.maximum(jnp.dot(h, ws2_ref[...], preferred_element_type=f32)
                    + jnp.dot(neigh, wn2_ref[...], preferred_element_type=f32)
                    + bc2_ref[...], 0.0)
    # MLP head
    h = jnp.maximum(jnp.dot(h, w1_ref[...], preferred_element_type=f32)
                    + b1_ref[...], 0.0)
    h = jnp.maximum(jnp.dot(h, w2_ref[...], preferred_element_type=f32)
                    + b2_ref[...], 0.0)
    o_ref[...] = (jnp.dot(h, wo_ref[...], preferred_element_type=f32)
                  + bo_ref[...])           # (N, 1)


def build_mean_adj(edge_index, num_nodes):
    """Row-normalized dense adjacency so mean-aggregation == A @ x."""
    # TODO(synk): at pretrained-scale N use a CSR/segment aggregation with
    #             scalar-prefetched row offsets instead of a dense N x N matrix.
    src, dst = edge_index[0], edge_index[1]
    adj = jnp.zeros((num_nodes, num_nodes), jnp.float32).at[dst, src].add(1.0)
    deg = jnp.maximum(adj.sum(axis=1, keepdims=True), 1.0)
    return adj / deg


def sage_forward(params, x, edge_index):
    """Reconstructed SAGE_OneHot_MLP forward.  Returns per-node scalar [N]."""
    N = x.shape[0]
    a = build_mean_adj(edge_index, N)
    p = params
    args = (a, x.astype(jnp.float32),
            p["w_self1"], p["w_neigh1"], p["b_conv1"],
            p["w_self2"], p["w_neigh2"], p["b_conv2"],
            p["w1"], p["b1"], p["w2"], p["b2"], p["w_out"], p["b_out"])
    out = pl.pallas_call(
        _sage_kernel,
        grid=(1,),
        out_shape=jax.ShapeDtypeStruct((N, 1), jnp.float32),
        in_specs=[_full_spec(arg.shape) for arg in args],
        out_specs=_full_spec((N, 1)),
    )(*args)
    return out.reshape(N)


# ----------------------------------------------------------------------------
# Top-level forward (matches HyenaGraphSage_3MLP_cat_Reduced_Pretrained.forward)
# ----------------------------------------------------------------------------
def hyena_graphsage_forward(params, x, edge_index, inputs_embeds, attention_mask,
                            batch_size, cfg):
    mega_out = mega_forward(params["mega"], inputs_embeds.astype(jnp.int32),
                            attention_mask, cfg)                     # (B,)
    sage_out = sage_forward(params["sage"], x, edge_index)           # (N,)
    cat = jnp.stack([mega_out, sage_out[:batch_size]], axis=1)       # (B, 2)
    # final Linear(2, 1): negligible compute -> plain jnp (per perf review)
    logits = (cat @ params["fc_w"] + params["fc_b"]).reshape(batch_size)
    return logits


# ----------------------------------------------------------------------------
# Deterministic parameter init (layer weights stacked for the fused kernel)
# ----------------------------------------------------------------------------
def make_params(key, cfg):
    D, H, NL = cfg["d_model"], cfg["num_heads"], cfg["num_layers"]
    Dh = D // H
    h1, h2, h3 = cfg["hidden1"], cfg["hidden2"], cfg["hidden3"]
    Fin, Hc = cfg["in_channels"], cfg["hidden_channels"]
    sh1, sh2 = cfg["sage_hidden1"], cfg["sage_hidden2"]

    keys = iter(jax.random.split(key, 64))

    def xav(shape):
        fan_in, fan_out = shape[-2], shape[-1]
        limit = (6.0 / (fan_in + fan_out)) ** 0.5
        return jax.random.uniform(next(keys), shape, jnp.float32, -limit, limit)

    mega = {
        "tok_emb": jax.random.normal(next(keys), (cfg["vocab"], D), jnp.float32) * 0.02,
        "pos_emb": jax.random.normal(next(keys), (cfg["max_pos"], D), jnp.float32) * 0.02,
        # fused QKV projection: columns = [q | k | v], heads contiguous Dh-wide
        "wqkv": xav((NL, D, 3 * D)),
        "bqkv": jnp.zeros((NL, 1, 3 * D), jnp.float32),
        # output projection pre-split per head: (NL, H, Dh, D)
        "wo": xav((NL, H, Dh, D)),
        "bo": jnp.zeros((NL, 1, D), jnp.float32),
        "w1": xav((D, h1)), "b1": jnp.zeros((1, h1), jnp.float32),
        "w2": xav((h1, h2)), "b2": jnp.zeros((1, h2), jnp.float32),
        "w3": xav((h2, h3)), "b3": jnp.zeros((1, h3), jnp.float32),
        # regression head over cat([h1,h2,h3]) pre-split per branch
        "wo1": xav((h1, 1)), "wo2": xav((h2, 1)), "wo3": xav((h3, 1)),
        "b_out": jnp.zeros((1, 1), jnp.float32),
    }
    sage = {
        "w_self1": xav((Fin, Hc)), "w_neigh1": xav((Fin, Hc)),
        "b_conv1": jnp.zeros((1, Hc), jnp.float32),
        "w_self2": xav((Hc, Hc)), "w_neigh2": xav((Hc, Hc)),
        "b_conv2": jnp.zeros((1, Hc), jnp.float32),
        "w1": xav((Hc, sh1)), "b1": jnp.zeros((1, sh1), jnp.float32),
        "w2": xav((sh1, sh2)), "b2": jnp.zeros((1, sh2), jnp.float32),
        "w_out": xav((sh2, 1)), "b_out": jnp.zeros((1, 1), jnp.float32),
    }
    return {"mega": mega, "sage": sage,
            "fc_w": xav((2, 1)), "fc_b": jnp.zeros((1,), jnp.float32)}


# ----------------------------------------------------------------------------
if __name__ == "__main__":
    cfg = dict(
        vocab=64, max_pos=64,
        d_model=8, num_heads=2, num_layers=2, chunk_size=8,
        hidden1=32, hidden2=16, hidden3=8,
        in_channels=4, hidden_channels=32, sage_hidden1=16, sage_hidden2=8,
    )
    B = 2            # batch_size
    L = 16           # sequence length (2 chunks of 8)
    N_nodes = 8      # graph nodes (>= batch_size)
    E = 16           # edges

    key = jax.random.PRNGKey(0)
    kp, kx, ke, ki = jax.random.split(key, 4)

    params = make_params(kp, cfg)

    x = jax.random.normal(kx, (N_nodes, cfg["in_channels"]), jnp.float32)
    edge_index = jax.random.randint(ke, (2, E), 0, N_nodes, jnp.int32)
    inputs_embeds = jax.random.randint(ki, (B, L), 0, cfg["vocab"], jnp.int32)
    # pad last 4 positions of each sequence
    attention_mask = jnp.concatenate(
        [jnp.ones((B, L - 4), jnp.int32), jnp.zeros((B, 4), jnp.int32)], axis=1)

    fwd = jax.jit(functools.partial(hyena_graphsage_forward,
                                    batch_size=B, cfg=cfg))
    logits = fwd(params, x, edge_index, inputs_embeds, attention_mask)
    logits = jax.block_until_ready(logits)
    assert logits.shape == (B,)
    print("KERNEL_OK")
</pallas_src>

<mosaic_0001>
module attributes {stable_mosaic.version = 11 : i64} {
  func.func @_mega_kernel(%arg0: i32, %arg1: memref<32x8xf32, #tpu.memory_space<vmem>>, %arg2: memref<2x32xf32, #tpu.memory_space<vmem>>, %arg3: memref<4x1x8xf32, #tpu.memory_space<vmem>>, %arg4: memref<2x8x24xf32, #tpu.memory_space<vmem>>, %arg5: memref<2x1x24xf32, #tpu.memory_space<vmem>>, %arg6: memref<2x2x4x8xf32, #tpu.memory_space<vmem>>, %arg7: memref<2x1x8xf32, #tpu.memory_space<vmem>>, %arg8: memref<8x32xf32, #tpu.memory_space<vmem>>, %arg9: memref<1x32xf32, #tpu.memory_space<vmem>>, %arg10: memref<32x16xf32, #tpu.memory_space<vmem>>, %arg11: memref<1x16xf32, #tpu.memory_space<vmem>>, %arg12: memref<16x8xf32, #tpu.memory_space<vmem>>, %arg13: memref<1x8xf32, #tpu.memory_space<vmem>>, %arg14: memref<32x1xf32, #tpu.memory_space<vmem>>, %arg15: memref<16x1xf32, #tpu.memory_space<vmem>>, %arg16: memref<8x1xf32, #tpu.memory_space<vmem>>, %arg17: memref<1x1xf32, #tpu.memory_space<vmem>>, %arg18: memref<2x1xf32, #tpu.memory_space<vmem>>) attributes {dimension_semantics = [#tpu.dimension_semantics<arbitrary>], iteration_bounds = array<i64: 1>, scalar_prefetch = 0 : i64, scratch_operands = 0 : i64, tpu.core_type = #tpu.core_type<tc>, window_params = [{pipeline_mode = #tpu.pipeline_mode<synchronous>, transform_indices = @transform_0, window_bounds = array<i64: 32, 8>}, {pipeline_mode = #tpu.pipeline_mode<synchronous>, transform_indices = @transform_1, window_bounds = array<i64: 2, 32>}, {pipeline_mode = #tpu.pipeline_mode<synchronous>, transform_indices = @transform_2, window_bounds = array<i64: 4, 1, 8>}, {pipeline_mode = #tpu.pipeline_mode<synchronous>, transform_indices = @transform_3, window_bounds = array<i64: 2, 8, 24>}, {pipeline_mode = #tpu.pipeline_mode<synchronous>, transform_indices = @transform_4, window_bounds = array<i64: 2, 1, 24>}, {pipeline_mode = #tpu.pipeline_mode<synchronous>, transform_indices = @transform_5, window_bounds = array<i64: 2, 2, 4, 8>}, {pipeline_mode = #tpu.pipeline_mode<synchronous>, transform_indices = @transform_6, window_bounds = array<i64: 2, 1, 8>}, {pipeline_mode = #tpu.pipeline_mode<synchronous>, transform_indices = @transform_7, window_bounds = array<i64: 8, 32>}, {pipeline_mode = #tpu.pipeline_mode<synchronous>, transform_indices = @transform_8, window_bounds = array<i64: 1, 32>}, {pipeline_mode = #tpu.pipeline_mode<synchronous>, transform_indices = @transform_9, window_bounds = array<i64: 32, 16>}, {pipeline_mode = #tpu.pipeline_mode<synchronous>, transform_indices = @transform_10, window_bounds = array<i64: 1, 16>}, {pipeline_mode = #tpu.pipeline_mode<synchronous>, transform_indices = @transform_11, window_bounds = array<i64: 16, 8>}, {pipeline_mode = #tpu.pipeline_mode<synchronous>, transform_indices = @transform_12, window_bounds = array<i64: 1, 8>}, {pipeline_mode = #tpu.pipeline_mode<synchronous>, transform_indices = @transform_13, window_bounds = array<i64: 32, 1>}, {pipeline_mode = #tpu.pipeline_mode<synchronous>, transform_indices = @transform_14, window_bounds = array<i64: 16, 1>}, {pipeline_mode = #tpu.pipeline_mode<synchronous>, transform_indices = @transform_15, window_bounds = array<i64: 8, 1>}, {pipeline_mode = #tpu.pipeline_mode<synchronous>, transform_indices = @transform_16, window_bounds = array<i64: 1, 1>}, {pipeline_mode = #tpu.pipeline_mode<synchronous>, transform_indices = @transform_17, window_bounds = array<i64: 2, 1>}]} {
    %c0 = arith.constant 0 : index
    %c0_0 = arith.constant 0 : index
    %0 = vector.load %arg1[%c0, %c0_0] : memref<32x8xf32, #tpu.memory_space<vmem>>, vector<32x8xf32>
    %c0_1 = arith.constant 0 : index
    %c0_2 = arith.constant 0 : index
    %c0_3 = arith.constant 0 : index
    %1 = vector.load %arg3[%c0_1, %c0_2, %c0_3] : memref<4x1x8xf32, #tpu.memory_space<vmem>>, vector<4x1x8xf32>
    %c0_4 = arith.constant 0 : index
    %c0_5 = arith.constant 0 : index
    %c0_6 = arith.constant 0 : index
    %2 = vector.load %arg4[%c0_4, %c0_5, %c0_6] : memref<2x8x24xf32, #tpu.memory_space<vmem>>, vector<1x8x24xf32>
    %3 = vector.shape_cast %2 : vector<1x8x24xf32> to vector<8x24xf32>
    %c0_7 = arith.constant 0 : index
    %c0_8 = arith.constant 0 : index
    %c0_9 = arith.constant 0 : index
    %4 = vector.load %arg5[%c0_7, %c0_8, %c0_9] : memref<2x1x24xf32, #tpu.memory_space<vmem>>, vector<1x1x24xf32>
    %5 = vector.shape_cast %4 : vector<1x1x24xf32> to vector<1x24xf32>
    %c0_10 = arith.constant 0 : index
    %c0_11 = arith.constant 0 : index
    %c0_12 = arith.constant 0 : index
    %6 = vector.load %arg7[%c0_10, %c0_11, %c0_12] : memref<2x1x8xf32, #tpu.memory_space<vmem>>, vector<1x1x8xf32>
    %7 = vector.shape_cast %6 : vector<1x1x8xf32> to vector<1x8xf32>
    %cst = arith.constant dense<0.000000e+00> : vector<32x24xf32>
    %8 = tpu.matmul %0, %3, %cst {dimension_numbers = #tpu.dot_dimension_numbers<[1], [0], [0], [1], [0, 0, 1, 1], [], []>} : vector<32x8xf32>, vector<8x24xf32>, vector<32x24xf32> -> vector<32x24xf32>
    %9 = vector.broadcast %5 : vector<1x24xf32> to vector<32x24xf32>
    %10 = arith.addf %8, %9 : vector<32x24xf32>
    %cst_13 = arith.constant 0.000000e+00 : f32
    %11 = vector.broadcast %cst_13 : f32 to vector<32x8xf32>
    %12 = vector.extract_strided_slice %10 {offsets = [0, 0], sizes = [32, 4], strides = [1, 1]} : vector<32x24xf32> to vector<32x4xf32>
    %cst_14 = arith.constant 5.000000e-01 : f32
    %13 = vector.broadcast %cst_14 : f32 to vector<32x4xf32>
    %14 = arith.mulf %12, %13 : vector<32x4xf32>
    %15 = vector.shape_cast %14 : vector<32x4xf32> to vector<4x8x4xf32>
    %16 = vector.extract_strided_slice %10 {offsets = [0, 8], sizes = [32, 4], strides = [1, 1]} : vector<32x24xf32> to vector<32x4xf32>
    %17 = vector.shape_cast %16 : vector<32x4xf32> to vector<4x8x4xf32>
    %18 = vector.extract_strided_slice %10 {offsets = [0, 16], sizes = [32, 4], strides = [1, 1]} : vector<32x24xf32> to vector<32x4xf32>
    %19 = vector.shape_cast %18 : vector<32x4xf32> to vector<4x8x4xf32>
    "tpu.trace_start"() <{level = 10 : i32, message = "gqd,gkd->gqk"}> : () -> ()
    %cst_15 = arith.constant dense<0.000000e+00> : vector<4x8x8xf32>
    %20 = tpu.matmul %15, %17, %cst_15 {dimension_numbers = #tpu.dot_dimension_numbers<[2], [2], [1], [1], [0, 0, 0, 1, 1, 1], [0], [0]>} : vector<4x8x4xf32>, vector<4x8x4xf32>, vector<4x8x8xf32> -> vector<4x8x8xf32>
    "tpu.trace_stop"() : () -> ()
    %21 = vector.broadcast %1 : vector<4x1x8xf32> to vector<4x8x8xf32>
    %22 = arith.addf %20, %21 : vector<4x8x8xf32>
    %cst_16 = arith.constant dense<0xFF800000> : vector<4x8xf32>
    %23 = vector.multi_reduction <maximumf>, %22, %cst_16 [2] : vector<4x8x8xf32> to vector<4x8xf32>
    %24 = vector.shape_cast %23 : vector<4x8xf32> to vector<4x8x1xf32>
    %25 = vector.broadcast %24 : vector<4x8x1xf32> to vector<4x8x8xf32>
    %26 = arith.subf %22, %25 : vector<4x8x8xf32>
    %27 = math.exp %26 : vector<4x8x8xf32>
    %cst_17 = arith.constant dense<0.000000e+00> : vector<4x8xf32>
    %28 = vector.multi_reduction <add>, %27, %cst_17 [2] : vector<4x8x8xf32> to vector<4x8xf32>
    %29 = vector.shape_cast %28 : vector<4x8xf32> to vector<4x8x1xf32>
    %30 = tpu.reciprocal %29 {approx = true} : vector<4x8x1xf32> -> vector<4x8x1xf32>
    %31 = vector.broadcast %30 : vector<4x8x1xf32> to vector<4x8x8xf32>
    %32 = arith.mulf %27, %31 : vector<4x8x8xf32>
    "tpu.trace_start"() <{level = 10 : i32, message = "gqk,gkd->gqd"}> : () -> ()
    %cst_18 = arith.constant dense<0.000000e+00> : vector<4x8x4xf32>
    %33 = tpu.matmul %32, %19, %cst_18 {dimension_numbers = #tpu.dot_dimension_numbers<[2], [1], [1], [2], [0, 0, 0, 1, 1, 2], [0], [0]>} : vector<4x8x8xf32>, vector<4x8x4xf32>, vector<4x8x4xf32> -> vector<4x8x4xf32>
    "tpu.trace_stop"() : () -> ()
    %34 = vector.shape_cast %33 : vector<4x8x4xf32> to vector<32x4xf32>
    %c0_19 = arith.constant 0 : index
    %c0_20 = arith.constant 0 : index
    %c0_21 = arith.constant 0 : index
    %c0_22 = arith.constant 0 : index
    %35 = vector.load %arg6[%c0_19, %c0_20, %c0_21, %c0_22] : memref<2x2x4x8xf32, #tpu.memory_space<vmem>>, vector<1x1x4x8xf32>
    %36 = vector.shape_cast %35 : vector<1x1x4x8xf32> to vector<4x8xf32>
    %cst_23 = arith.constant dense<0.000000e+00> : vector<32x8xf32>
    %37 = tpu.matmul %34, %36, %cst_23 {dimension_numbers = #tpu.dot_dimension_numbers<[1], [0], [0], [1], [0, 0, 1, 1], [], []>} : vector<32x4xf32>, vector<4x8xf32>, vector<32x8xf32> -> vector<32x8xf32>
    %38 = arith.addf %11, %37 : vector<32x8xf32>
    %39 = vector.extract_strided_slice %10 {offsets = [0, 4], sizes = [32, 4], strides = [1, 1]} : vector<32x24xf32> to vector<32x4xf32>
    %cst_24 = arith.constant 5.000000e-01 : f32
    %40 = vector.broadcast %cst_24 : f32 to vector<32x4xf32>
    %41 = arith.mulf %39, %40 : vector<32x4xf32>
    %42 = vector.shape_cast %41 : vector<32x4xf32> to vector<4x8x4xf32>
    %43 = vector.extract_strided_slice %10 {offsets = [0, 12], sizes = [32, 4], strides = [1, 1]} : vector<32x24xf32> to vector<32x4xf32>
    %44 = vector.shape_cast %43 : vector<32x4xf32> to vector<4x8x4xf32>
    %45 = vector.extract_strided_slice %10 {offsets = [0, 20], sizes = [32, 4], strides = [1, 1]} : vector<32x24xf32> to vector<32x4xf32>
    %46 = vector.shape_cast %45 : vector<32x4xf32> to vector<4x8x4xf32>
    "tpu.trace_start"() <{level = 10 : i32, message = "gqd,gkd->gqk"}> : () -> ()
    %cst_25 = arith.constant dense<0.000000e+00> : vector<4x8x8xf32>
    %47 = tpu.matmul %42, %44, %cst_25 {dimension_numbers = #tpu.dot_dimension_numbers<[2], [2], [1], [1], [0, 0, 0, 1, 1, 1], [0], [0]>} : vector<4x8x4xf32>, vector<4x8x4xf32>, vector<4x8x8xf32> -> vector<4x8x8xf32>
    "tpu.trace_stop"() : () -> ()
    %48 = vector.broadcast %1 : vector<4x1x8xf32> to vector<4x8x8xf32>
    %49 = arith.addf %47, %48 : vector<4x8x8xf32>
    %cst_26 = arith.constant dense<0xFF800000> : vector<4x8xf32>
    %50 = vector.multi_reduction <maximumf>, %49, %cst_26 [2] : vector<4x8x8xf32> to vector<4x8xf32>
    %51 = vector.shape_cast %50 : vector<4x8xf32> to vector<4x8x1xf32>
    %52 = vector.broadcast %51 : vector<4x8x1xf32> to vector<4x8x8xf32>
    %53 = arith.subf %49, %52 : vector<4x8x8xf32>
    %54 = math.exp %53 : vector<4x8x8xf32>
    %cst_27 = arith.constant dense<0.000000e+00> : vector<4x8xf32>
    %55 = vector.multi_reduction <add>, %54, %cst_27 [2] : vector<4x8x8xf32> to vector<4x8xf32>
    %56 = vector.shape_cast %55 : vector<4x8xf32> to vector<4x8x1xf32>
    %57 = tpu.reciprocal %56 {approx = true} : vector<4x8x1xf32> -> vector<4x8x1xf32>
    %58 = vector.broadcast %57 : vector<4x8x1xf32> to vector<4x8x8xf32>
    %59 = arith.mulf %54, %58 : vector<4x8x8xf32>
    "tpu.trace_start"() <{level = 10 : i32, message = "gqk,gkd->gqd"}> : () -> ()
    %cst_28 = arith.constant dense<0.000000e+00> : vector<4x8x4xf32>
    %60 = tpu.matmul %59, %46, %cst_28 {dimension_numbers = #tpu.dot_dimension_numbers<[2], [1], [1], [2], [0, 0, 0, 1, 1, 2], [0], [0]>} : vector<4x8x8xf32>, vector<4x8x4xf32>, vector<4x8x4xf32> -> vector<4x8x4xf32>
    "tpu.trace_stop"() : () -> ()
    %61 = vector.shape_cast %60 : vector<4x8x4xf32> to vector<32x4xf32>
    %c0_29 = arith.constant 0 : index
    %c1 = arith.constant 1 : index
    %c0_30 = arith.constant 0 : index
    %c0_31 = arith.constant 0 : index
    %62 = vector.load %arg6[%c0_29, %c1, %c0_30, %c0_31] : memref<2x2x4x8xf32, #tpu.memory_space<vmem>>, vector<1x1x4x8xf32>
    %63 = vector.shape_cast %62 : vector<1x1x4x8xf32> to vector<4x8xf32>
    %cst_32 = arith.constant dense<0.000000e+00> : vector<32x8xf32>
    %64 = tpu.matmul %61, %63, %cst_32 {dimension_numbers = #tpu.dot_dimension_numbers<[1], [0], [0], [1], [0, 0, 1, 1], [], []>} : vector<32x4xf32>, vector<4x8xf32>, vector<32x8xf32> -> vector<32x8xf32>
    %65 = arith.addf %38, %64 : vector<32x8xf32>
    %66 = arith.addf %0, %65 : vector<32x8xf32>
    %67 = vector.broadcast %7 : vector<1x8xf32> to vector<32x8xf32>
    %68 = arith.addf %66, %67 : vector<32x8xf32>
    %c1_33 = arith.constant 1 : index
    %c0_34 = arith.constant 0 : index
    %c0_35 = arith.constant 0 : index
    %69 = vector.load %arg4[%c1_33, %c0_34, %c0_35] : memref<2x8x24xf32, #tpu.memory_space<vmem>>, vector<1x8x24xf32>
    %70 = vector.shape_cast %69 : vector<1x8x24xf32> to vector<8x24xf32>
    %c1_36 = arith.constant 1 : index
    %c0_37 = arith.constant 0 : index
    %c0_38 = arith.constant 0 : index
    %71 = vector.load %arg5[%c1_36, %c0_37, %c0_38] : memref<2x1x24xf32, #tpu.memory_space<vmem>>, vector<1x1x24xf32>
    %72 = vector.shape_cast %71 : vector<1x1x24xf32> to vector<1x24xf32>
    %c1_39 = arith.constant 1 : index
    %c0_40 = arith.constant 0 : index
    %c0_41 = arith.constant 0 : index
    %73 = vector.load %arg7[%c1_39, %c0_40, %c0_41] : memref<2x1x8xf32, #tpu.memory_space<vmem>>, vector<1x1x8xf32>
    %74 = vector.shape_cast %73 : vector<1x1x8xf32> to vector<1x8xf32>
    %cst_42 = arith.constant dense<0.000000e+00> : vector<32x24xf32>
    %75 = tpu.matmul %68, %70, %cst_42 {dimension_numbers = #tpu.dot_dimension_numbers<[1], [0], [0], [1], [0, 0, 1, 1], [], []>} : vector<32x8xf32>, vector<8x24xf32>, vector<32x24xf32> -> vector<32x24xf32>
    %76 = vector.broadcast %72 : vector<1x24xf32> to vector<32x24xf32>
    %77 = arith.addf %75, %76 : vector<32x24xf32>
    %cst_43 = arith.constant 0.000000e+00 : f32
    %78 = vector.broadcast %cst_43 : f32 to vector<32x8xf32>
    %79 = vector.extract_strided_slice %77 {offsets = [0, 0], sizes = [32, 4], strides = [1, 1]} : vector<32x24xf32> to vector<32x4xf32>
    %cst_44 = arith.constant 5.000000e-01 : f32
    %80 = vector.broadcast %cst_44 : f32 to vector<32x4xf32>
    %81 = arith.mulf %79, %80 : vector<32x4xf32>
    %82 = vector.shape_cast %81 : vector<32x4xf32> to vector<4x8x4xf32>
    %83 = vector.extract_strided_slice %77 {offsets = [0, 8], sizes = [32, 4], strides = [1, 1]} : vector<32x24xf32> to vector<32x4xf32>
    %84 = vector.shape_cast %83 : vector<32x4xf32> to vector<4x8x4xf32>
    %85 = vector.extract_strided_slice %77 {offsets = [0, 16], sizes = [32, 4], strides = [1, 1]} : vector<32x24xf32> to vector<32x4xf32>
    %86 = vector.shape_cast %85 : vector<32x4xf32> to vector<4x8x4xf32>
    "tpu.trace_start"() <{level = 10 : i32, message = "gqd,gkd->gqk"}> : () -> ()
    %cst_45 = arith.constant dense<0.000000e+00> : vector<4x8x8xf32>
    %87 = tpu.matmul %82, %84, %cst_45 {dimension_numbers = #tpu.dot_dimension_numbers<[2], [2], [1], [1], [0, 0, 0, 1, 1, 1], [0], [0]>} : vector<4x8x4xf32>, vector<4x8x4xf32>, vector<4x8x8xf32> -> vector<4x8x8xf32>
    "tpu.trace_stop"() : () -> ()
    %88 = vector.broadcast %1 : vector<4x1x8xf32> to vector<4x8x8xf32>
    %89 = arith.addf %87, %88 : vector<4x8x8xf32>
    %cst_46 = arith.constant dense<0xFF800000> : vector<4x8xf32>
    %90 = vector.multi_reduction <maximumf>, %89, %cst_46 [2] : vector<4x8x8xf32> to vector<4x8xf32>
    %91 = vector.shape_cast %90 : vector<4x8xf32> to vector<4x8x1xf32>
    %92 = vector.broadcast %91 : vector<4x8x1xf32> to vector<4x8x8xf32>
    %93 = arith.subf %89, %92 : vector<4x8x8xf32>
    %94 = math.exp %93 : vector<4x8x8xf32>
    %cst_47 = arith.constant dense<0.000000e+00> : vector<4x8xf32>
    %95 = vector.multi_reduction <add>, %94, %cst_47 [2] : vector<4x8x8xf32> to vector<4x8xf32>
    %96 = vector.shape_cast %95 : vector<4x8xf32> to vector<4x8x1xf32>
    %97 = tpu.reciprocal %96 {approx = true} : vector<4x8x1xf32> -> vector<4x8x1xf32>
    %98 = vector.broadcast %97 : vector<4x8x1xf32> to vector<4x8x8xf32>
    %99 = arith.mulf %94, %98 : vector<4x8x8xf32>
    "tpu.trace_start"() <{level = 10 : i32, message = "gqk,gkd->gqd"}> : () -> ()
    %cst_48 = arith.constant dense<0.000000e+00> : vector<4x8x4xf32>
    %100 = tpu.matmul %99, %86, %cst_48 {dimension_numbers = #tpu.dot_dimension_numbers<[2], [1], [1], [2], [0, 0, 0, 1, 1, 2], [0], [0]>} : vector<4x8x8xf32>, vector<4x8x4xf32>, vector<4x8x4xf32> -> vector<4x8x4xf32>
    "tpu.trace_stop"() : () -> ()
    %101 = vector.shape_cast %100 : vector<4x8x4xf32> to vector<32x4xf32>
    %c1_49 = arith.constant 1 : index
    %c0_50 = arith.constant 0 : index
    %c0_51 = arith.constant 0 : index
    %c0_52 = arith.constant 0 : index
    %102 = vector.load %arg6[%c1_49, %c0_50, %c0_51, %c0_52] : memref<2x2x4x8xf32, #tpu.memory_space<vmem>>, vector<1x1x4x8xf32>
    %103 = vector.shape_cast %102 : vector<1x1x4x8xf32> to vector<4x8xf32>
    %cst_53 = arith.constant dense<0.000000e+00> : vector<32x8xf32>
    %104 = tpu.matmul %101, %103, %cst_53 {dimension_numbers = #tpu.dot_dimension_numbers<[1], [0], [0], [1], [0, 0, 1, 1], [], []>} : vector<32x4xf32>, vector<4x8xf32>, vector<32x8xf32> -> vector<32x8xf32>
    %105 = arith.addf %78, %104 : vector<32x8xf32>
    %106 = vector.extract_strided_slice %77 {offsets = [0, 4], sizes = [32, 4], strides = [1, 1]} : vector<32x24xf32> to vector<32x4xf32>
    %cst_54 = arith.constant 5.000000e-01 : f32
    %107 = vector.broadcast %cst_54 : f32 to vector<32x4xf32>
    %108 = arith.mulf %106, %107 : vector<32x4xf32>
    %109 = vector.shape_cast %108 : vector<32x4xf32> to vector<4x8x4xf32>
    %110 = vector.extract_strided_slice %77 {offsets = [0, 12], sizes = [32, 4], strides = [1, 1]} : vector<32x24xf32> to vector<32x4xf32>
    %111 = vector.shape_cast %110 : vector<32x4xf32> to vector<4x8x4xf32>
    %112 = vector.extract_strided_slice %77 {offsets = [0, 20], sizes = [32, 4], strides = [1, 1]} : vector<32x24xf32> to vector<32x4xf32>
    %113 = vector.shape_cast %112 : vector<32x4xf32> to vector<4x8x4xf32>
    "tpu.trace_start"() <{level = 10 : i32, message = "gqd,gkd->gqk"}> : () -> ()
    %cst_55 = arith.constant dense<0.000000e+00> : vector<4x8x8xf32>
    %114 = tpu.matmul %109, %111, %cst_55 {dimension_numbers = #tpu.dot_dimension_numbers<[2], [2], [1], [1], [0, 0, 0, 1, 1, 1], [0], [0]>} : vector<4x8x4xf32>, vector<4x8x4xf32>, vector<4x8x8xf32> -> vector<4x8x8xf32>
    "tpu.trace_stop"() : () -> ()
    %115 = vector.broadcast %1 : vector<4x1x8xf32> to vector<4x8x8xf32>
    %116 = arith.addf %114, %115 : vector<4x8x8xf32>
    %cst_56 = arith.constant dense<0xFF800000> : vector<4x8xf32>
    %117 = vector.multi_reduction <maximumf>, %116, %cst_56 [2] : vector<4x8x8xf32> to vector<4x8xf32>
    %118 = vector.shape_cast %117 : vector<4x8xf32> to vector<4x8x1xf32>
    %119 = vector.broadcast %118 : vector<4x8x1xf32> to vector<4x8x8xf32>
    %120 = arith.subf %116, %119 : vector<4x8x8xf32>
    %121 = math.exp %120 : vector<4x8x8xf32>
    %cst_57 = arith.constant dense<0.000000e+00> : vector<4x8xf32>
    %122 = vector.multi_reduction <add>, %121, %cst_57 [2] : vector<4x8x8xf32> to vector<4x8xf32>
    %123 = vector.shape_cast %122 : vector<4x8xf32> to vector<4x8x1xf32>
    %124 = tpu.reciprocal %123 {approx = true} : vector<4x8x1xf32> -> vector<4x8x1xf32>
    %125 = vector.broadcast %124 : vector<4x8x1xf32> to vector<4x8x8xf32>
    %126 = arith.mulf %121, %125 : vector<4x8x8xf32>
    "tpu.trace_start"() <{level = 10 : i32, message = "gqk,gkd->gqd"}> : () -> ()
    %cst_58 = arith.constant dense<0.000000e+00> : vector<4x8x4xf32>
    %127 = tpu.matmul %126, %113, %cst_58 {dimension_numbers = #tpu.dot_dimension_numbers<[2], [1], [1], [2], [0, 0, 0, 1, 1, 2], [0], [0]>} : vector<4x8x8xf32>, vector<4x8x4xf32>, vector<4x8x4xf32> -> vector<4x8x4xf32>
    "tpu.trace_stop"() : () -> ()
    %128 = vector.shape_cast %127 : vector<4x8x4xf32> to vector<32x4xf32>
    %c1_59 = arith.constant 1 : index
    %c1_60 = arith.constant 1 : index
    %c0_61 = arith.constant 0 : index
    %c0_62 = arith.constant 0 : index
    %129 = vector.load %arg6[%c1_59, %c1_60, %c0_61, %c0_62] : memref<2x2x4x8xf32, #tpu.memory_space<vmem>>, vector<1x1x4x8xf32>
    %130 = vector.shape_cast %129 : vector<1x1x4x8xf32> to vector<4x8xf32>
    %cst_63 = arith.constant dense<0.000000e+00> : vector<32x8xf32>
    %131 = tpu.matmul %128, %130, %cst_63 {dimension_numbers = #tpu.dot_dimension_numbers<[1], [0], [0], [1], [0, 0, 1, 1], [], []>} : vector<32x4xf32>, vector<4x8xf32>, vector<32x8xf32> -> vector<32x8xf32>
    %132 = arith.addf %105, %131 : vector<32x8xf32>
    %133 = arith.addf %68, %132 : vector<32x8xf32>
    %134 = vector.broadcast %74 : vector<1x8xf32> to vector<32x8xf32>
    %135 = arith.addf %133, %134 : vector<32x8xf32>
    %c0_64 = arith.constant 0 : index
    %c0_65 = arith.constant 0 : index
    %136 = vector.load %arg2[%c0_64, %c0_65] : memref<2x32xf32, #tpu.memory_space<vmem>>, vector<2x32xf32>
    %cst_66 = arith.constant dense<0.000000e+00> : vector<2x8xf32>
    %137 = tpu.matmul %136, %135, %cst_66 {dimension_numbers = #tpu.dot_dimension_numbers<[1], [0], [0], [1], [0, 0, 1, 1], [], []>} : vector<2x32xf32>, vector<32x8xf32>, vector<2x8xf32> -> vector<2x8xf32>
    %c0_67 = arith.constant 0 : index
    %c0_68 = arith.constant 0 : index
    %138 = vector.load %arg8[%c0_67, %c0_68] : memref<8x32xf32, #tpu.memory_space<vmem>>, vector<8x32xf32>
    %cst_69 = arith.constant dense<0.000000e+00> : vector<2x32xf32>
    %139 = tpu.matmul %137, %138, %cst_69 {dimension_numbers = #tpu.dot_dimension_numbers<[1], [0], [0], [1], [0, 0, 1, 1], [], []>} : vector<2x8xf32>, vector<8x32xf32>, vector<2x32xf32> -> vector<2x32xf32>
    %c0_70 = arith.constant 0 : index
    %c0_71 = arith.constant 0 : index
    %140 = vector.load %arg9[%c0_70, %c0_71] : memref<1x32xf32, #tpu.memory_space<vmem>>, vector<1x32xf32>
    %141 = vector.broadcast %140 : vector<1x32xf32> to vector<2x32xf32>
    %142 = arith.addf %139, %141 : vector<2x32xf32>
    %cst_72 = arith.constant 0.000000e+00 : f32
    %143 = vector.broadcast %cst_72 : f32 to vector<2x32xf32>
    %144 = arith.maximumf %142, %143 : vector<2x32xf32>
    %c0_73 = arith.constant 0 : index
    %c0_74 = arith.constant 0 : index
    %145 = vector.load %arg10[%c0_73, %c0_74] : memref<32x16xf32, #tpu.memory_space<vmem>>, vector<32x16xf32>
    %cst_75 = arith.constant dense<0.000000e+00> : vector<2x16xf32>
    %146 = tpu.matmul %144, %145, %cst_75 {dimension_numbers = #tpu.dot_dimension_numbers<[1], [0], [0], [1], [0, 0, 1, 1], [], []>} : vector<2x32xf32>, vector<32x16xf32>, vector<2x16xf32> -> vector<2x16xf32>
    %c0_76 = arith.constant 0 : index
    %c0_77 = arith.constant 0 : index
    %147 = vector.load %arg11[%c0_76, %c0_77] : memref<1x16xf32, #tpu.memory_space<vmem>>, vector<1x16xf32>
    %148 = vector.broadcast %147 : vector<1x16xf32> to vector<2x16xf32>
    %149 = arith.addf %146, %148 : vector<2x16xf32>
    %cst_78 = arith.constant 0.000000e+00 : f32
    %150 = vector.broadcast %cst_78 : f32 to vector<2x16xf32>
    %151 = arith.maximumf %149, %150 : vector<2x16xf32>
    %c0_79 = arith.constant 0 : index
    %c0_80 = arith.constant 0 : index
    %152 = vector.load %arg12[%c0_79, %c0_80] : memref<16x8xf32, #tpu.memory_space<vmem>>, vector<16x8xf32>
    %cst_81 = arith.constant dense<0.000000e+00> : vector<2x8xf32>
    %153 = tpu.matmul %151, %152, %cst_81 {dimension_numbers = #tpu.dot_dimension_numbers<[1], [0], [0], [1], [0, 0, 1, 1], [], []>} : vector<2x16xf32>, vector<16x8xf32>, vector<2x8xf32> -> vector<2x8xf32>
    %c0_82 = arith.constant 0 : index
    %c0_83 = arith.constant 0 : index
    %154 = vector.load %arg13[%c0_82, %c0_83] : memref<1x8xf32, #tpu.memory_space<vmem>>, vector<1x8xf32>
    %155 = vector.broadcast %154 : vector<1x8xf32> to vector<2x8xf32>
    %156 = arith.addf %153, %155 : vector<2x8xf32>
    %cst_84 = arith.constant 0.000000e+00 : f32
    %157 = vector.broadcast %cst_84 : f32 to vector<2x8xf32>
    %158 = arith.maximumf %156, %157 : vector<2x8xf32>
    %c0_85 = arith.constant 0 : index
    %c0_86 = arith.constant 0 : index
    %159 = vector.load %arg14[%c0_85, %c0_86] : memref<32x1xf32, #tpu.memory_space<vmem>>, vector<32x1xf32>
    %cst_87 = arith.constant dense<0.000000e+00> : vector<2x1xf32>
    %160 = tpu.matmul %144, %159, %cst_87 {dimension_numbers = #tpu.dot_dimension_numbers<[1], [0], [0], [1], [0, 0, 1, 1], [], []>} : vector<2x32xf32>, vector<32x1xf32>, vector<2x1xf32> -> vector<2x1xf32>
    %c0_88 = arith.constant 0 : index
    %c0_89 = arith.constant 0 : index
    %161 = vector.load %arg15[%c0_88, %c0_89] : memref<16x1xf32, #tpu.memory_space<vmem>>, vector<16x1xf32>
    %cst_90 = arith.constant dense<0.000000e+00> : vector<2x1xf32>
    %162 = tpu.matmul %151, %161, %cst_90 {dimension_numbers = #tpu.dot_dimension_numbers<[1], [0], [0], [1], [0, 0, 1, 1], [], []>} : vector<2x16xf32>, vector<16x1xf32>, vector<2x1xf32> -> vector<2x1xf32>
    %163 = arith.addf %160, %162 : vector<2x1xf32>
    %c0_91 = arith.constant 0 : index
    %c0_92 = arith.constant 0 : index
    %164 = vector.load %arg16[%c0_91, %c0_92] : memref<8x1xf32, #tpu.memory_space<vmem>>, vector<8x1xf32>
    %cst_93 = arith.constant dense<0.000000e+00> : vector<2x1xf32>
    %165 = tpu.matmul %158, %164, %cst_93 {dimension_numbers = #tpu.dot_dimension_numbers<[1], [0], [0], [1], [0, 0, 1, 1], [], []>} : vector<2x8xf32>, vector<8x1xf32>, vector<2x1xf32> -> vector<2x1xf32>
    %166 = arith.addf %163, %165 : vector<2x1xf32>
    %c0_94 = arith.constant 0 : index
    %c0_95 = arith.constant 0 : index
    %167 = vector.load %arg17[%c0_94, %c0_95] : memref<1x1xf32, #tpu.memory_space<vmem>>, vector<1x1xf32>
    %168 = vector.broadcast %167 : vector<1x1xf32> to vector<2x1xf32>
    %169 = arith.addf %166, %168 : vector<2x1xf32>
    %c0_96 = arith.constant 0 : index
    %c0_97 = arith.constant 0 : index
    %170 = vector.load %arg18[%c0_96, %c0_97] : memref<2x1xf32, #tpu.memory_space<vmem>>, vector<2x1xf32>
    tpu.vector_store %arg18[%c0_96, %c0_97], %169 {strides = array<i32>} : memref<2x1xf32, #tpu.memory_space<vmem>>, vector<2x1xf32>,
    return
  }
  func.func @transform_0(%arg0: i32) -> (i32, i32) {
    %c0_i32 = arith.constant 0 : i32
    %c0_i32_0 = arith.constant 0 : i32
    %c0_i32_1 = arith.constant 0 : i32
    return %c0_i32, %c0_i32_0 : i32, i32
  }
  func.func @transform_1(%arg0: i32) -> (i32, i32) {
    %c0_i32 = arith.constant 0 : i32
    %c0_i32_0 = arith.constant 0 : i32
    %c0_i32_1 = arith.constant 0 : i32
    return %c0_i32, %c0_i32_0 : i32, i32
  }
  func.func @transform_2(%arg0: i32) -> (i32, i32, i32) {
    %c0_i32 = arith.constant 0 : i32
    %c0_i32_0 = arith.constant 0 : i32
    %c0_i32_1 = arith.constant 0 : i32
    %c0_i32_2 = arith.constant 0 : i32
    return %c0_i32, %c0_i32_0, %c0_i32_1 : i32, i32, i32
  }
  func.func @transform_3(%arg0: i32) -> (i32, i32, i32) {
    %c0_i32 = arith.constant 0 : i32
    %c0_i32_0 = arith.constant 0 : i32
    %c0_i32_1 = arith.constant 0 : i32
    %c0_i32_2 = arith.constant 0 : i32
    return %c0_i32, %c0_i32_0, %c0_i32_1 : i32, i32, i32
  }
  func.func @transform_4(%arg0: i32) -> (i32, i32, i32) {
    %c0_i32 = arith.constant 0 : i32
    %c0_i32_0 = arith.constant 0 : i32
    %c0_i32_1 = arith.constant 0 : i32
    %c0_i32_2 = arith.constant 0 : i32
    return %c0_i32, %c0_i32_0, %c0_i32_1 : i32, i32, i32
  }
  func.func @transform_5(%arg0: i32) -> (i32, i32, i32, i32) {
    %c0_i32 = arith.constant 0 : i32
    %c0_i32_0 = arith.constant 0 : i32
    %c0_i32_1 = arith.constant 0 : i32
    %c0_i32_2 = arith.constant 0 : i32
    %c0_i32_3 = arith.constant 0 : i32
    return %c0_i32, %c0_i32_0, %c0_i32_1, %c0_i32_2 : i32, i32, i32, i32
  }
  func.func @transform_6(%arg0: i32) -> (i32, i32, i32) {
    %c0_i32 = arith.constant 0 : i32
    %c0_i32_0 = arith.constant 0 : i32
    %c0_i32_1 = arith.constant 0 : i32
    %c0_i32_2 = arith.constant 0 : i32
    return %c0_i32, %c0_i32_0, %c0_i32_1 : i32, i32, i32
  }
  func.func @transform_7(%arg0: i32) -> (i32, i32) {
    %c0_i32 = arith.constant 0 : i32
    %c0_i32_0 = arith.constant 0 : i32
    %c0_i32_1 = arith.constant 0 : i32
    return %c0_i32, %c0_i32_0 : i32, i32
  }
  func.func @transform_8(%arg0: i32) -> (i32, i32) {
    %c0_i32 = arith.constant 0 : i32
    %c0_i32_0 = arith.constant 0 : i32
    %c0_i32_1 = arith.constant 0 : i32
    return %c0_i32, %c0_i32_0 : i32, i32
  }
  func.func @transform_9(%arg0: i32) -> (i32, i32) {
    %c0_i32 = arith.constant 0 : i32
    %c0_i32_0 = arith.constant 0 : i32
    %c0_i32_1 = arith.constant 0 : i32
    return %c0_i32, %c0_i32_0 : i32, i32
  }
  func.func @transform_10(%arg0: i32) -> (i32, i32) {
    %c0_i32 = arith.constant 0 : i32
    %c0_i32_0 = arith.constant 0 : i32
    %c0_i32_1 = arith.constant 0 : i32
    return %c0_i32, %c0_i32_0 : i32, i32
  }
  func.func @transform_11(%arg0: i32) -> (i32, i32) {
    %c0_i32 = arith.constant 0 : i32
    %c0_i32_0 = arith.constant 0 : i32
    %c0_i32_1 = arith.constant 0 : i32
    return %c0_i32, %c0_i32_0 : i32, i32
  }
  func.func @transform_12(%arg0: i32) -> (i32, i32) {
    %c0_i32 = arith.constant 0 : i32
    %c0_i32_0 = arith.constant 0 : i32
    %c0_i32_1 = arith.constant 0 : i32
    return %c0_i32, %c0_i32_0 : i32, i32
  }
  func.func @transform_13(%arg0: i32) -> (i32, i32) {
    %c0_i32 = arith.constant 0 : i32
    %c0_i32_0 = arith.constant 0 : i32
    %c0_i32_1 = arith.constant 0 : i32
    return %c0_i32, %c0_i32_0 : i32, i32
  }
  func.func @transform_14(%arg0: i32) -> (i32, i32) {
    %c0_i32 = arith.constant 0 : i32
    %c0_i32_0 = arith.constant 0 : i32
    %c0_i32_1 = arith.constant 0 : i32
    return %c0_i32, %c0_i32_0 : i32, i32
  }
  func.func @transform_15(%arg0: i32) -> (i32, i32) {
    %c0_i32 = arith.constant 0 : i32
    %c0_i32_0 = arith.constant 0 : i32
    %c0_i32_1 = arith.constant 0 : i32
    return %c0_i32, %c0_i32_0 : i32, i32
  }
  func.func @transform_16(%arg0: i32) -> (i32, i32) {
    %c0_i32 = arith.constant 0 : i32
    %c0_i32_0 = arith.constant 0 : i32
    %c0_i32_1 = arith.constant 0 : i32
    return %c0_i32, %c0_i32_0 : i32, i32
  }
  func.func @transform_17(%arg0: i32) -> (i32, i32) {
    %c0_i32 = arith.constant 0 : i32
    %c0_i32_0 = arith.constant 0 : i32
    %c0_i32_1 = arith.constant 0 : i32
    return %c0_i32, %c0_i32_0 : i32, i32
  }
}

module attributes {stable_mosaic.version = 11 : i64} {
  func.func @_sage_kernel(%arg0: i32, %arg1: memref<8x8xf32, #tpu.memory_space<vmem>>, %arg2: memref<8x4xf32, #tpu.memory_space<vmem>>, %arg3: memref<4x32xf32, #tpu.memory_space<vmem>>, %arg4: memref<4x32xf32, #tpu.memory_space<vmem>>, %arg5: memref<1x32xf32, #tpu.memory_space<vmem>>, %arg6: memref<32x32xf32, #tpu.memory_space<vmem>>, %arg7: memref<32x32xf32, #tpu.memory_space<vmem>>, %arg8: memref<1x32xf32, #tpu.memory_space<vmem>>, %arg9: memref<32x16xf32, #tpu.memory_space<vmem>>, %arg10: memref<1x16xf32, #tpu.memory_space<vmem>>, %arg11: memref<16x8xf32, #tpu.memory_space<vmem>>, %arg12: memref<1x8xf32, #tpu.memory_space<vmem>>, %arg13: memref<8x1xf32, #tpu.memory_space<vmem>>, %arg14: memref<1x1xf32, #tpu.memory_space<vmem>>, %arg15: memref<8x1xf32, #tpu.memory_space<vmem>>) attributes {dimension_semantics = [#tpu.dimension_semantics<arbitrary>], iteration_bounds = array<i64: 1>, scalar_prefetch = 0 : i64, scratch_operands = 0 : i64, tpu.core_type = #tpu.core_type<tc>, window_params = [{pipeline_mode = #tpu.pipeline_mode<synchronous>, transform_indices = @transform_0, window_bounds = array<i64: 8, 8>}, {pipeline_mode = #tpu.pipeline_mode<synchronous>, transform_indices = @transform_1, window_bounds = array<i64: 8, 4>}, {pipeline_mode = #tpu.pipeline_mode<synchronous>, transform_indices = @transform_2, window_bounds = array<i64: 4, 32>}, {pipeline_mode = #tpu.pipeline_mode<synchronous>, transform_indices = @transform_3, window_bounds = array<i64: 4, 32>}, {pipeline_mode = #tpu.pipeline_mode<synchronous>, transform_indices = @transform_4, window_bounds = array<i64: 1, 32>}, {pipeline_mode = #tpu.pipeline_mode<synchronous>, transform_indices = @transform_5, window_bounds = array<i64: 32, 32>}, {pipeline_mode = #tpu.pipeline_mode<synchronous>, transform_indices = @transform_6, window_bounds = array<i64: 32, 32>}, {pipeline_mode = #tpu.pipeline_mode<synchronous>, transform_indices = @transform_7, window_bounds = array<i64: 1, 32>}, {pipeline_mode = #tpu.pipeline_mode<synchronous>, transform_indices = @transform_8, window_bounds = array<i64: 32, 16>}, {pipeline_mode = #tpu.pipeline_mode<synchronous>, transform_indices = @transform_9, window_bounds = array<i64: 1, 16>}, {pipeline_mode = #tpu.pipeline_mode<synchronous>, transform_indices = @transform_10, window_bounds = array<i64: 16, 8>}, {pipeline_mode = #tpu.pipeline_mode<synchronous>, transform_indices = @transform_11, window_bounds = array<i64: 1, 8>}, {pipeline_mode = #tpu.pipeline_mode<synchronous>, transform_indices = @transform_12, window_bounds = array<i64: 8, 1>}, {pipeline_mode = #tpu.pipeline_mode<synchronous>, transform_indices = @transform_13, window_bounds = array<i64: 1, 1>}, {pipeline_mode = #tpu.pipeline_mode<synchronous>, transform_indices = @transform_14, window_bounds = array<i64: 8, 1>}]} {
    %c0 = arith.constant 0 : index
    %c0_0 = arith.constant 0 : index
    %0 = vector.load %arg1[%c0, %c0_0] : memref<8x8xf32, #tpu.memory_space<vmem>>, vector<8x8xf32>
    %c0_1 = arith.constant 0 : index
    %c0_2 = arith.constant 0 : index
    %1 = vector.load %arg2[%c0_1, %c0_2] : memref<8x4xf32, #tpu.memory_space<vmem>>, vector<8x4xf32>
    %cst = arith.constant dense<0.000000e+00> : vector<8x4xf32>
    %2 = tpu.matmul %0, %1, %cst {dimension_numbers = #tpu.dot_dimension_numbers<[1], [0], [0], [1], [0, 0, 1, 1], [], []>} : vector<8x8xf32>, vector<8x4xf32>, vector<8x4xf32> -> vector<8x4xf32>
    %c0_3 = arith.constant 0 : index
    %c0_4 = arith.constant 0 : index
    %3 = vector.load %arg3[%c0_3, %c0_4] : memref<4x32xf32, #tpu.memory_space<vmem>>, vector<4x32xf32>
    %cst_5 = arith.constant dense<0.000000e+00> : vector<8x32xf32>
    %4 = tpu.matmul %1, %3, %cst_5 {dimension_numbers = #tpu.dot_dimension_numbers<[1], [0], [0], [1], [0, 0, 1, 1], [], []>} : vector<8x4xf32>, vector<4x32xf32>, vector<8x32xf32> -> vector<8x32xf32>
    %c0_6 = arith.constant 0 : index
    %c0_7 = arith.constant 0 : index
    %5 = vector.load %arg4[%c0_6, %c0_7] : memref<4x32xf32, #tpu.memory_space<vmem>>, vector<4x32xf32>
    %cst_8 = arith.constant dense<0.000000e+00> : vector<8x32xf32>
    %6 = tpu.matmul %2, %5, %cst_8 {dimension_numbers = #tpu.dot_dimension_numbers<[1], [0], [0], [1], [0, 0, 1, 1], [], []>} : vector<8x4xf32>, vector<4x32xf32>, vector<8x32xf32> -> vector<8x32xf32>
    %7 = arith.addf %4, %6 : vector<8x32xf32>
    %c0_9 = arith.constant 0 : index
    %c0_10 = arith.constant 0 : index
    %8 = vector.load %arg5[%c0_9, %c0_10] : memref<1x32xf32, #tpu.memory_space<vmem>>, vector<1x32xf32>
    %9 = vector.broadcast %8 : vector<1x32xf32> to vector<8x32xf32>
    %10 = arith.addf %7, %9 : vector<8x32xf32>
    %cst_11 = arith.constant 0.000000e+00 : f32
    %11 = vector.broadcast %cst_11 : f32 to vector<8x32xf32>
    %12 = arith.maximumf %10, %11 : vector<8x32xf32>
    %cst_12 = arith.constant dense<0.000000e+00> : vector<8x32xf32>
    %13 = tpu.matmul %0, %12, %cst_12 {dimension_numbers = #tpu.dot_dimension_numbers<[1], [0], [0], [1], [0, 0, 1, 1], [], []>} : vector<8x8xf32>, vector<8x32xf32>, vector<8x32xf32> -> vector<8x32xf32>
    %c0_13 = arith.constant 0 : index
    %c0_14 = arith.constant 0 : index
    %14 = vector.load %arg6[%c0_13, %c0_14] : memref<32x32xf32, #tpu.memory_space<vmem>>, vector<32x32xf32>
    %cst_15 = arith.constant dense<0.000000e+00> : vector<8x32xf32>
    %15 = tpu.matmul %12, %14, %cst_15 {dimension_numbers = #tpu.dot_dimension_numbers<[1], [0], [0], [1], [0, 0, 1, 1], [], []>} : vector<8x32xf32>, vector<32x32xf32>, vector<8x32xf32> -> vector<8x32xf32>
    %c0_16 = arith.constant 0 : index
    %c0_17 = arith.constant 0 : index
    %16 = vector.load %arg7[%c0_16, %c0_17] : memref<32x32xf32, #tpu.memory_space<vmem>>, vector<32x32xf32>
    %cst_18 = arith.constant dense<0.000000e+00> : vector<8x32xf32>
    %17 = tpu.matmul %13, %16, %cst_18 {dimension_numbers = #tpu.dot_dimension_numbers<[1], [0], [0], [1], [0, 0, 1, 1], [], []>} : vector<8x32xf32>, vector<32x32xf32>, vector<8x32xf32> -> vector<8x32xf32>
    %18 = arith.addf %15, %17 : vector<8x32xf32>
    %c0_19 = arith.constant 0 : index
    %c0_20 = arith.constant 0 : index
    %19 = vector.load %arg8[%c0_19, %c0_20] : memref<1x32xf32, #tpu.memory_space<vmem>>, vector<1x32xf32>
    %20 = vector.broadcast %19 : vector<1x32xf32> to vector<8x32xf32>
    %21 = arith.addf %18, %20 : vector<8x32xf32>
    %cst_21 = arith.constant 0.000000e+00 : f32
    %22 = vector.broadcast %cst_21 : f32 to vector<8x32xf32>
    %23 = arith.maximumf %21, %22 : vector<8x32xf32>
    %c0_22 = arith.constant 0 : index
    %c0_23 = arith.constant 0 : index
    %24 = vector.load %arg9[%c0_22, %c0_23] : memref<32x16xf32, #tpu.memory_space<vmem>>, vector<32x16xf32>
    %cst_24 = arith.constant dense<0.000000e+00> : vector<8x16xf32>
    %25 = tpu.matmul %23, %24, %cst_24 {dimension_numbers = #tpu.dot_dimension_numbers<[1], [0], [0], [1], [0, 0, 1, 1], [], []>} : vector<8x32xf32>, vector<32x16xf32>, vector<8x16xf32> -> vector<8x16xf32>
    %c0_25 = arith.constant 0 : index
    %c0_26 = arith.constant 0 : index
    %26 = vector.load %arg10[%c0_25, %c0_26] : memref<1x16xf32, #tpu.memory_space<vmem>>, vector<1x16xf32>
    %27 = vector.broadcast %26 : vector<1x16xf32> to vector<8x16xf32>
    %28 = arith.addf %25, %27 : vector<8x16xf32>
    %cst_27 = arith.constant 0.000000e+00 : f32
    %29 = vector.broadcast %cst_27 : f32 to vector<8x16xf32>
    %30 = arith.maximumf %28, %29 : vector<8x16xf32>
    %c0_28 = arith.constant 0 : index
    %c0_29 = arith.constant 0 : index
    %31 = vector.load %arg11[%c0_28, %c0_29] : memref<16x8xf32, #tpu.memory_space<vmem>>, vector<16x8xf32>
    %cst_30 = arith.constant dense<0.000000e+00> : vector<8x8xf32>
    %32 = tpu.matmul %30, %31, %cst_30 {dimension_numbers = #tpu.dot_dimension_numbers<[1], [0], [0], [1], [0, 0, 1, 1], [], []>} : vector<8x16xf32>, vector<16x8xf32>, vector<8x8xf32> -> vector<8x8xf32>
    %c0_31 = arith.constant 0 : index
    %c0_32 = arith.constant 0 : index
    %33 = vector.load %arg12[%c0_31, %c0_32] : memref<1x8xf32, #tpu.memory_space<vmem>>, vector<1x8xf32>
    %34 = vector.broadcast %33 : vector<1x8xf32> to vector<8x8xf32>
    %35 = arith.addf %32, %34 : vector<8x8xf32>
    %cst_33 = arith.constant 0.000000e+00 : f32
    %36 = vector.broadcast %cst_33 : f32 to vector<8x8xf32>
    %37 = arith.maximumf %35, %36 : vector<8x8xf32>
    %c0_34 = arith.constant 0 : index
    %c0_35 = arith.constant 0 : index
    %38 = vector.load %arg13[%c0_34, %c0_35] : memref<8x1xf32, #tpu.memory_space<vmem>>, vector<8x1xf32>
    %cst_36 = arith.constant dense<0.000000e+00> : vector<8x1xf32>
    %39 = tpu.matmul %37, %38, %cst_36 {dimension_numbers = #tpu.dot_dimension_numbers<[1], [0], [0], [1], [0, 0, 1, 1], [], []>} : vector<8x8xf32>, vector<8x1xf32>, vector<8x1xf32> -> vector<8x1xf32>
    %c0_37 = arith.constant 0 : index
    %c0_38 = arith.constant 0 : index
    %40 = vector.load %arg14[%c0_37, %c0_38] : memref<1x1xf32, #tpu.memory_space<vmem>>, vector<1x1xf32>
    %41 = vector.broadcast %40 : vector<1x1xf32> to vector<8x1xf32>
    %42 = arith.addf %39, %41 : vector<8x1xf32>
    %c0_39 = arith.constant 0 : index
    %c0_40 = arith.constant 0 : index
    %43 = vector.load %arg15[%c0_39, %c0_40] : memref<8x1xf32, #tpu.memory_space<vmem>>, vector<8x1xf32>
    tpu.vector_store %arg15[%c0_39, %c0_40], %42 {strides = array<i32>} : memref<8x1xf32, #tpu.memory_space<vmem>>, vector<8x1xf32>,
    return
  }
  func.func @transform_0(%arg0: i32) -> (i32, i32) {
    %c0_i32 = arith.constant 0 : i32
    %c0_i32_0 = arith.constant 0 : i32
    %c0_i32_1 = arith.constant 0 : i32
    return %c0_i32, %c0_i32_0 : i32, i32
  }
  func.func @transform_1(%arg0: i32) -> (i32, i32) {
    %c0_i32 = arith.constant 0 : i32
    %c0_i32_0 = arith.constant 0 : i32
    %c0_i32_1 = arith.constant 0 : i32
    return %c0_i32, %c0_i32_0 : i32, i32
  }
  func.func @transform_2(%arg0: i32) -> (i32, i32) {
    %c0_i32 = arith.constant 0 : i32
    %c0_i32_0 = arith.constant 0 : i32
    %c0_i32_1 = arith.constant 0 : i32
    return %c0_i32, %c0_i32_0 : i32, i32
  }
  func.func @transform_3(%arg0: i32) -> (i32, i32) {
    %c0_i32 = arith.constant 0 : i32
    %c0_i32_0 = arith.constant 0 : i32
    %c0_i32_1 = arith.constant 0 : i32
    return %c0_i32, %c0_i32_0 : i32, i32
  }
  func.func @transform_4(%arg0: i32) -> (i32, i32) {
    %c0_i32 = arith.constant 0 : i32
    %c0_i32_0 = arith.constant 0 : i32
    %c0_i32_1 = arith.constant 0 : i32
    return %c0_i32, %c0_i32_0 : i32, i32
  }
  func.func @transform_5(%arg0: i32) -> (i32, i32) {
    %c0_i32 = arith.constant 0 : i32
    %c0_i32_0 = arith.constant 0 : i32
    %c0_i32_1 = arith.constant 0 : i32
    return %c0_i32, %c0_i32_0 : i32, i32
  }
  func.func @transform_6(%arg0: i32) -> (i32, i32) {
    %c0_i32 = arith.constant 0 : i32
    %c0_i32_0 = arith.constant 0 : i32
    %c0_i32_1 = arith.constant 0 : i32
    return %c0_i32, %c0_i32_0 : i32, i32
  }
  func.func @transform_7(%arg0: i32) -> (i32, i32) {
    %c0_i32 = arith.constant 0 : i32
    %c0_i32_0 = arith.constant 0 : i32
    %c0_i32_1 = arith.constant 0 : i32
    return %c0_i32, %c0_i32_0 : i32, i32
  }
  func.func @transform_8(%arg0: i32) -> (i32, i32) {
    %c0_i32 = arith.constant 0 : i32
    %c0_i32_0 = arith.constant 0 : i32
    %c0_i32_1 = arith.constant 0 : i32
    return %c0_i32, %c0_i32_0 : i32, i32
  }
  func.func @transform_9(%arg0: i32) -> (i32, i32) {
    %c0_i32 = arith.constant 0 : i32
    %c0_i32_0 = arith.constant 0 : i32
    %c0_i32_1 = arith.constant 0 : i32
    return %c0_i32, %c0_i32_0 : i32, i32
  }
  func.func @transform_10(%arg0: i32) -> (i32, i32) {
    %c0_i32 = arith.constant 0 : i32
    %c0_i32_0 = arith.constant 0 : i32
    %c0_i32_1 = arith.constant 0 : i32
    return %c0_i32, %c0_i32_0 : i32, i32
  }
  func.func @transform_11(%arg0: i32) -> (i32, i32) {
    %c0_i32 = arith.constant 0 : i32
    %c0_i32_0 = arith.constant 0 : i32
    %c0_i32_1 = arith.constant 0 : i32
    return %c0_i32, %c0_i32_0 : i32, i32
  }
  func.func @transform_12(%arg0: i32) -> (i32, i32) {
    %c0_i32 = arith.constant 0 : i32
    %c0_i32_0 = arith.constant 0 : i32
    %c0_i32_1 = arith.constant 0 : i32
    return %c0_i32, %c0_i32_0 : i32, i32
  }
  func.func @transform_13(%arg0: i32) -> (i32, i32) {
    %c0_i32 = arith.constant 0 : i32
    %c0_i32_0 = arith.constant 0 : i32
    %c0_i32_1 = arith.constant 0 : i32
    return %c0_i32, %c0_i32_0 : i32, i32
  }
  func.func @transform_14(%arg0: i32) -> (i32, i32) {
    %c0_i32 = arith.constant 0 : i32
    %c0_i32_0 = arith.constant 0 : i32
    %c0_i32_1 = arith.constant 0 : i32
    return %c0_i32, %c0_i32_0 : i32, i32
  }
}

</mosaic_0001>

<llo_original>
// kernel: hyena_graphsage_forward.3
$region0: #{hyena_graphsage_forward.3}
  #allocation0 [shape = 'u32[]', space=smem, size = 0x4, offset = 0x4, fixed_abs, tag = 'smem constant byte address 0x4 - core index']
  #allocation1 [shape = 'u32[72,128]{1,0:T(1,128)}', space=vmem, size = 0x9000, scoped, tag = 'internal scratch']
  #allocation2 [shape = 'f32[1,1]{1,0:T(1,128)S(1)}', space=vmem, size = 0x200, scoped, tag = 'scoped memory for hyena_graphsage_forward.3']
  %s0 = inlined_call_operand.vmem [shape: f32[8,8], index: 0, kind: input, shape index: {}]
  %s1 = inlined_call_operand.vmem [shape: f32[8,4], index: 1, kind: input, shape index: {}]
  %s2 = inlined_call_operand.vmem [shape: f32[4,32], index: 2, kind: input, shape index: {}]
  %s3 = inlined_call_operand.vmem [shape: f32[4,32], index: 3, kind: input, shape index: {}]
  %s4 = inlined_call_operand.vmem [shape: f32[1,32], index: 4, kind: input, shape index: {}]
  %s5 = inlined_call_operand.vmem [shape: f32[32,32], index: 5, kind: input, shape index: {}]
  %s6 = inlined_call_operand.vmem [shape: f32[32,32], index: 6, kind: input, shape index: {}]
  %s7 = inlined_call_operand.vmem [shape: f32[1,32], index: 7, kind: input, shape index: {}]
  %s8 = inlined_call_operand.vmem [shape: f32[32,16], index: 8, kind: input, shape index: {}]
  %s9 = inlined_call_operand.vmem [shape: f32[1,16], index: 9, kind: input, shape index: {}]
  %s10 = inlined_call_operand.vmem [shape: f32[16,8], index: 10, kind: input, shape index: {}]
  %s11 = inlined_call_operand.vmem [shape: f32[1,8], index: 11, kind: input, shape index: {}]
  %s12 = inlined_call_operand.vmem [shape: f32[8,1], index: 12, kind: input, shape index: {}]
  %s13 = inlined_call_operand.<no memory space> [shape: f32[1,1], index: 13, kind: input, shape index: {}]
  %s14 = inlined_call_operand.vmem [shape: f32[8,1], index: 14, kind: output, shape index: {}]
  %s15 = sld [smem:[#allocation0]]
  $region66: #{hyena_graphsage_forward.3} parent=0
    _
  %s17 = ssub.s32 1, %s15
  %s18 = scalar_select 0, %s17, %s15
  %v19 = vstv %s13
  %20 = vst [vmem:[#allocation2] sm:$0x1] %v19
  // Predicated region
  $region2: #{hyena_graphsage_forward.3} parent=0 // pred_check
    _
  $region3: #{hyena_graphsage_forward.3} parent=0 // pred_check_branch
    %22 = sbr.rel (0) target = $region5
  $region4: #{hyena_graphsage_forward.3} parent=0 // pred_region
    _
  $region5: #{hyena_graphsage_forward.3} parent=0 // pred_fallthru
    _
  // Predicated region
  $region6: #{hyena_graphsage_forward.3} parent=0 // pred_check
    _
  $region7: #{hyena_graphsage_forward.3} parent=0 // pred_check_branch
    %24 = sbr.rel (0) target = $region9
  $region8: #{hyena_graphsage_forward.3} parent=0 // pred_region
    _
  $region9: #{hyena_graphsage_forward.3} parent=0 // pred_fallthru
    _
  // Predicated region
  $region10: #{hyena_graphsage_forward.3} parent=0 // pred_check
    _
  $region11: #{hyena_graphsage_forward.3} parent=0 // pred_check_branch
    %26 = sbr.rel (0) target = $region13
  $region12: #{hyena_graphsage_forward.3} parent=0 // pred_region
    _
  $region13: #{hyena_graphsage_forward.3} parent=0 // pred_fallthru
    _
  // Predicated region
  $region14: #{hyena_graphsage_forward.3} parent=0 // pred_check
    _
  $region15: #{hyena_graphsage_forward.3} parent=0 // pred_check_branch
    %28 = sbr.rel (0) target = $region17
  $region16: #{hyena_graphsage_forward.3} parent=0 // pred_region
    _
  $region17: #{hyena_graphsage_forward.3} parent=0 // pred_fallthru
    _
  // Predicated region
  $region18: #{hyena_graphsage_forward.3} parent=0 // pred_check
    _
  $region19: #{hyena_graphsage_forward.3} parent=0 // pred_check_branch
    %30 = sbr.rel (0) target = $region21
  $region20: #{hyena_graphsage_forward.3} parent=0 // pred_region
    _
  $region21: #{hyena_graphsage_forward.3} parent=0 // pred_fallthru
    _
  // Predicated region
  $region22: #{hyena_graphsage_forward.3} parent=0 // pred_check
    _
  $region23: #{hyena_graphsage_forward.3} parent=0 // pred_check_branch
    %32 = sbr.rel (0) target = $region25
  $region24: #{hyena_graphsage_forward.3} parent=0 // pred_region
    _
  $region25: #{hyena_graphsage_forward.3} parent=0 // pred_fallthru
    _
  // Predicated region
  $region26: #{hyena_graphsage_forward.3} parent=0 // pred_check
    _
  $region27: #{hyena_graphsage_forward.3} parent=0 // pred_check_branch
    %34 = sbr.rel (0) target = $region29
  $region28: #{hyena_graphsage_forward.3} parent=0 // pred_region
    _
  $region29: #{hyena_graphsage_forward.3} parent=0 // pred_fallthru
    _
  // Predicated region
  $region30: #{hyena_graphsage_forward.3} parent=0 // pred_check
    _
  $region31: #{hyena_graphsage_forward.3} parent=0 // pred_check_branch
    %36 = sbr.rel (0) target = $region33
  $region32: #{hyena_graphsage_forward.3} parent=0 // pred_region
    _
  $region33: #{hyena_graphsage_forward.3} parent=0 // pred_fallthru
    _
  // Predicated region
  $region34: #{hyena_graphsage_forward.3} parent=0 // pred_check
    _
  $region35: #{hyena_graphsage_forward.3} parent=0 // pred_check_branch
    %38 = sbr.rel (0) target = $region37
  $region36: #{hyena_graphsage_forward.3} parent=0 // pred_region
    _
  $region37: #{hyena_graphsage_forward.3} parent=0 // pred_fallthru
    _
  // Predicated region
  $region38: #{hyena_graphsage_forward.3} parent=0 // pred_check
    _
  $region39: #{hyena_graphsage_forward.3} parent=0 // pred_check_branch
    %40 = sbr.rel (0) target = $region41
  $region40: #{hyena_graphsage_forward.3} parent=0 // pred_region
    _
  $region41: #{hyena_graphsage_forward.3} parent=0 // pred_fallthru
    _
  // Predicated region
  $region42: #{hyena_graphsage_forward.3} parent=0 // pred_check
    _
  $region43: #{hyena_graphsage_forward.3} parent=0 // pred_check_branch
    %42 = sbr.rel (0) target = $region45
  $region44: #{hyena_graphsage_forward.3} parent=0 // pred_region
    _
  $region45: #{hyena_graphsage_forward.3} parent=0 // pred_fallthru
    _
  // Predicated region
  $region46: #{hyena_graphsage_forward.3} parent=0 // pred_check
    _
  $region47: #{hyena_graphsage_forward.3} parent=0 // pred_check_branch
    %44 = sbr.rel (0) target = $region49
  $region48: #{hyena_graphsage_forward.3} parent=0 // pred_region
    _
  $region49: #{hyena_graphsage_forward.3} parent=0 // pred_fallthru
    _
  // Predicated region
  $region50: #{hyena_graphsage_forward.3} parent=0 // pred_check
    _
  $region51: #{hyena_graphsage_forward.3} parent=0 // pred_check_branch
    %46 = sbr.rel (0) target = $region53
  $region52: #{hyena_graphsage_forward.3} parent=0 // pred_region
    _
  $region53: #{hyena_graphsage_forward.3} parent=0 // pred_fallthru
    _
  // Predicated region
  $region54: #{hyena_graphsage_forward.3} parent=0 // pred_check
    _
  $region55: #{hyena_graphsage_forward.3} parent=0 // pred_check_branch
    %48 = sbr.rel (0) target = $region57
  $region56: #{hyena_graphsage_forward.3} parent=0 // pred_region
    _
  $region57: #{hyena_graphsage_forward.3} parent=0 // pred_fallthru
    _
  %v49 = vld [vmem:[%s0] sm:$0xff]
  %v50 = vld [vmem:[%s1] sm:$0xff]
  %vm51 = vcmask 64512
  %v53 = vsel %vm51, %v49, 0
  %55 = vmatpush.msra.mxu0 0.0
  %56 = vmatpush.msra.mxu0 0.0
  %57 = vmatpush.msra.mxu0 0.0
  %58 = vmatpush.msra.mxu0 0.0
  %59 = vmatpush.msra.mxu0 0.0
  %60 = vmatpush.msra.mxu0 0.0
  %61 = vmatpush.msra.mxu0 0.0
  %62 = vmatpush.msra.mxu0 0.0
  %63 = vmatpush.msra.mxu0 0.0
  %64 = vmatpush.msra.mxu0 0.0
  %65 = vmatpush.msra.mxu0 0.0
  %66 = vmatpush.msra.mxu0 0.0
  %67 = vmatpush.msra.mxu0 0.0
  %68 = vmatpush.msra.mxu0 0.0
  %69 = vmatpush.msra.mxu0 0.0
  %70 = vmatpush.msra.mxu0 %v50
  %71 = vmatmul.f32.gmra.mxu0 %v53
  %v72 = vpop.f32.mrf.mxu0
  %v73 = vadd.f32 0.0, %v72
  %74 = vdwg.mxu0
  %v75 = vld [vmem:[%s2] sm:$0xf]
  %v76 = vld [vmem:[%s3] sm:$0xf]
  %vm77 = vcmask 31744
  %v79 = vsel %vm77, %v73, 0
  %vm81 = vcmask 1043456
  %v83 = vsel %vm81, %v76, 0
  %85 = vmatpush.msra.mxu0 0.0
  %86 = vmatpush.msra.mxu0 0.0
  %87 = vmatpush.msra.mxu0 0.0
  %88 = vmatpush.msra.mxu0 0.0
  %89 = vmatpush.msra.mxu0 0.0
  %90 = vmatpush.msra.mxu0 0.0
  %91 = vmatpush.msra.mxu0 0.0
  %92 = vmatpush.msra.mxu0 0.0
  %93 = vmatpush.msra.mxu0 0.0
  %94 = vmatpush.msra.mxu0 0.0
  %95 = vmatpush.msra.mxu0 0.0
  %96 = vmatpush.msra.mxu0 0.0
  %97 = vmatpush.msra.mxu0 0.0
  %98 = vmatpush.msra.mxu0 0.0
  %99 = vmatpush.msra.mxu0 0.0
  %100 = vmatpush.msra.mxu0 %v83
  %101 = vmatmul.f32.gmra.mxu0 %v79
  %v102 = vpop.f32.mrf.mxu0
  %v103 = vadd.f32 0.0, %v102
  %104 = vdwg.mxu0
  %v106 = vsel %vm77, %v50, 0
  %v109 = vsel %vm81, %v75, 0
  %111 = vmatpush.msra.mxu0 0.0
  %112 = vmatpush.msra.mxu0 0.0
  %113 = vmatpush.msra.mxu0 0.0
  %114 = vmatpush.msra.mxu0 0.0
  %115 = vmatpush.msra.mxu0 0.0
  %116 = vmatpush.msra.mxu0 0.0
  %117 = vmatpush.msra.mxu0 0.0
  %118 = vmatpush.msra.mxu0 0.0
  %119 = vmatpush.msra.mxu0 0.0
  %120 = vmatpush.msra.mxu0 0.0
  %121 = vmatpush.msra.mxu0 0.0
  %122 = vmatpush.msra.mxu0 0.0
  %123 = vmatpush.msra.mxu0 0.0
  %124 = vmatpush.msra.mxu0 0.0
  %125 = vmatpush.msra.mxu0 0.0
  %126 = vmatpush.msra.mxu0 %v109
  %127 = vmatmul.f32.gmra.mxu0 %v106
  %v128 = vpop.f32.mrf.mxu0
  %v129 = vadd.f32 %v103, %v128
  %130 = vdwg.mxu0
  %v131 = vld [vmem:[%s4] sm:$0x1]
  %v133 = vperm.slane %v131, 0
  %v135 = vadd.f32 %v129, %v133
  %v136 = vmax.f32 %v135, 0.0
  %137 = vmatpush.msra.mxu0 0.0
  %138 = vmatpush.msra.mxu0 0.0
  %139 = vmatpush.msra.mxu0 0.0
  %140 = vmatpush.msra.mxu0 0.0
  %141 = vmatpush.msra.mxu0 0.0
  %142 = vmatpush.msra.mxu0 0.0
  %143 = vmatpush.msra.mxu0 0.0
  %144 = vmatpush.msra.mxu0 0.0
  %145 = vmatpush.msra.mxu0 0.0
  %146 = vmatpush.msra.mxu0 0.0
  %147 = vmatpush.msra.mxu0 0.0
  %148 = vmatpush.msra.mxu0 0.0
  %149 = vmatpush.msra.mxu0 0.0
  %150 = vmatpush.msra.mxu0 0.0
  %151 = vmatpush.msra.mxu0 0.0
  %152 = vmatpush.msra.mxu0 %v136
  %153 = vmatmul.f32.gmra.mxu0 %v53
  %v154 = vpop.f32.mrf.mxu0
  %v155 = vadd.f32 0.0, %v154
  %156 = vdwg.mxu0
  %v157 = vld [vmem:[%s5] sm:$0xff]
  %v158 = vld [vmem:[%s5 + $0x8] sm:$0xff]
  %v159 = vld [vmem:[%s5 + $0x10] sm:$0xff]
  %v160 = vld [vmem:[%s5 + $0x18] sm:$0xff]
  %v161 = vld [vmem:[%s6] sm:$0xff]
  %v162 = vld [vmem:[%s6 + $0x8] sm:$0xff]
  %v163 = vld [vmem:[%s6 + $0x10] sm:$0xff]
  %v164 = vld [vmem:[%s6 + $0x18] sm:$0xff]
  %vm165 = vcmask 261120
  %v167 = vsel %vm165, %v155, 0
  %169 = vmatpush.msra.mxu0 0.0
  %170 = vmatpush.msra.mxu0 0.0
  %171 = vmatpush.msra.mxu0 0.0
  %172 = vmatpush.msra.mxu0 0.0
  %173 = vmatpush.msra.mxu0 0.0
  %174 = vmatpush.msra.mxu0 0.0
  %175 = vmatpush.msra.mxu0 0.0
  %176 = vmatpush.msra.mxu0 0.0
  %177 = vmatpush.msra.mxu0 0.0
  %178 = vmatpush.msra.mxu0 0.0
  %179 = vmatpush.msra.mxu0 0.0
  %180 = vmatpush.msra.mxu0 0.0
  %181 = vmatpush.msra.mxu0 %v164
  %182 = vmatpush.msra.mxu0 %v163
  %183 = vmatpush.msra.mxu0 %v162
  %184 = vmatpush.msra.mxu0 %v161
  %185 = vmatmul.f32.gmra.mxu0 %v167
  %v186 = vpop.f32.mrf.mxu0
  %v187 = vadd.f32 0.0, %v186
  %188 = vdwg.mxu0
  %v190 = vsel %vm165, %v136, 0
  %192 = vmatpush.msra.mxu0 0.0
  %193 = vmatpush.msra.mxu0 0.0
  %194 = vmatpush.msra.mxu0 0.0
  %195 = vmatpush.msra.mxu0 0.0
  %196 = vmatpush.msra.mxu0 0.0
  %197 = vmatpush.msra.mxu0 0.0
  %198 = vmatpush.msra.mxu0 0.0
  %199 = vmatpush.msra.mxu0 0.0
  %200 = vmatpush.msra.mxu0 0.0
  %201 = vmatpush.msra.mxu0 0.0
  %202 = vmatpush.msra.mxu0 0.0
  %203 = vmatpush.msra.mxu0 0.0
  %204 = vmatpush.msra.mxu0 %v160
  %205 = vmatpush.msra.mxu0 %v159
  %206 = vmatpush.msra.mxu0 %v158
  %207 = vmatpush.msra.mxu0 %v157
  %208 = vmatmul.f32.gmra.mxu0 %v190
  %v209 = vpop.f32.mrf.mxu0
  %v210 = vadd.f32 %v187, %v209
  %211 = vdwg.mxu0
  %v212 = vld [vmem:[%s7] sm:$0x1]
  %v214 = vperm.slane %v212, 0
  %v216 = vadd.f32 %v210, %v214
  %v217 = vmax.f32 %v216, 0.0
  %v218 = vld [vmem:[%s8] sm:$0xff]
  %v219 = vld [vmem:[%s8 + $0x8] sm:$0xff]
  %v220 = vld [vmem:[%s8 + $0x10] sm:$0xff]
  %v221 = vld [vmem:[%s8 + $0x18] sm:$0xff]
  %v222 = vld [vmem:[%s9] sm:$0x1]
  %v224 = vperm.slane %v222, 0
  %v227 = vsel %vm165, %v217, 0
  %229 = vmatpush.msra.mxu0 0.0
  %230 = vmatpush.msra.mxu0 0.0
  %231 = vmatpush.msra.mxu0 0.0
  %232 = vmatpush.msra.mxu0 0.0
  %233 = vmatpush.msra.mxu0 0.0
  %234 = vmatpush.msra.mxu0 0.0
  %235 = vmatpush.msra.mxu0 0.0
  %236 = vmatpush.msra.mxu0 0.0
  %237 = vmatpush.msra.mxu0 0.0
  %238 = vmatpush.msra.mxu0 0.0
  %239 = vmatpush.msra.mxu0 0.0
  %240 = vmatpush.msra.mxu0 0.0
  %241 = vmatpush.msra.mxu0 %v221
  %242 = vmatpush.msra.mxu0 %v220
  %243 = vmatpush.msra.mxu0 %v219
  %244 = vmatpush.msra.mxu0 %v218
  %245 = vmatmul.f32.gmra.mxu0 %v227
  %v246 = vpop.f32.mrf.mxu0
  %v247 = vadd.f32 %v224, %v246
  %248 = vdwg.mxu0
  %v249 = vmax.f32 %v247, 0.0
  %v250 = vld [vmem:[%s10] sm:$0xff]
  %v251 = vld [vmem:[%s10 + $0x8] sm:$0xff]
  %v252 = vld [vmem:[%s11] sm:$0x1]
  %v254 = vperm.slane %v252, 0
  %vm256 = vcmask 130048
  %v258 = vsel %vm256, %v249, 0
  %260 = vmatpush.msra.mxu0 0.0
  %261 = vmatpush.msra.mxu0 0.0
  %262 = vmatpush.msra.mxu0 0.0
  %263 = vmatpush.msra.mxu0 0.0
  %264 = vmatpush.msra.mxu0 0.0
  %265 = vmatpush.msra.mxu0 0.0
  %266 = vmatpush.msra.mxu0 0.0
  %267 = vmatpush.msra.mxu0 0.0
  %268 = vmatpush.msra.mxu0 0.0
  %269 = vmatpush.msra.mxu0 0.0
  %270 = vmatpush.msra.mxu0 0.0
  %271 = vmatpush.msra.mxu0 0.0
  %272 = vmatpush.msra.mxu0 0.0
  %273 = vmatpush.msra.mxu0 0.0
  %274 = vmatpush.msra.mxu0 %v251
  %275 = vmatpush.msra.mxu0 %v250
  %276 = vmatmul.f32.gmra.mxu0 %v258
  %v277 = vpop.f32.mrf.mxu0
  %v278 = vadd.f32 %v254, %v277
  %279 = vdwg.mxu0
  %v280 = vmax.f32 %v278, 0.0
  %v281 = vld [vmem:[%s12] sm:$0xff]
  %v282 = vld [vmem:[#allocation2] sm:$0x1]
  %v284 = vperm.slane %v282, 0
  %v287 = vsel %vm51, %v280, 0
  %289 = vmatpush.msra.mxu0 0.0
  %290 = vmatpush.msra.mxu0 0.0
  %291 = vmatpush.msra.mxu0 0.0
  %292 = vmatpush.msra.mxu0 0.0
  %293 = vmatpush.msra.mxu0 0.0
  %294 = vmatpush.msra.mxu0 0.0
  %295 = vmatpush.msra.mxu0 0.0
  %296 = vmatpush.msra.mxu0 0.0
  %297 = vmatpush.msra.mxu0 0.0
  %298 = vmatpush.msra.mxu0 0.0
  %299 = vmatpush.msra.mxu0 0.0
  %300 = vmatpush.msra.mxu0 0.0
  %301 = vmatpush.msra.mxu0 0.0
  %302 = vmatpush.msra.mxu0 0.0
  %303 = vmatpush.msra.mxu0 0.0
  %304 = vmatpush.msra.mxu0 %v281
  %305 = vmatmul.f32.gmra.mxu0 %v287
  %v306 = vpop.f32.mrf.mxu0
  %v307 = vadd.f32 %v284, %v306
  %308 = vdwg.mxu0
  %vm309 = vcmask 7168
  %310 = vst.msk [vmem:[%s14] sm:$0xff] %vm309, %v307
  // Predicated region
  $region58: #{hyena_graphsage_forward.3} parent=0 // pred_check
    _
  $region59: #{hyena_graphsage_forward.3} parent=0 // pred_check_branch
    %312 = sbr.rel (0) target = $region61
  $region60: #{hyena_graphsage_forward.3} parent=0 // pred_region
    _
  $region61: #{hyena_graphsage_forward.3} parent=0 // pred_fallthru
    _
  // Predicated region
  $region62: #{hyena_graphsage_forward.3} parent=0 // pred_check
    _
  $region63: #{hyena_graphsage_forward.3} parent=0 // pred_check_branch
    %314 = sbr.rel (0) target = $region65
  $region64: #{hyena_graphsage_forward.3} parent=0 // pred_region
    _
  $region65: #{hyena_graphsage_forward.3} parent=0 // pred_fallthru
    _

// kernel: hyena_graphsage_forward.2
$region0: #{hyena_graphsage_forward.2}
  #allocation0 [shape = 'u32[]', space=smem, size = 0x4, offset = 0x4, fixed_abs, tag = 'smem constant byte address 0x4 - core index']
  #allocation1 [shape = 'u32[72,128]{1,0:T(1,128)}', space=vmem, size = 0x9000, scoped, tag = 'internal scratch']
  #allocation2 [shape = 'f32[1,1]{1,0:T(1,128)S(1)}', space=vmem, size = 0x200, scoped, tag = 'scoped memory for hyena_graphsage_forward.2']
  %s0 = inlined_call_operand.vmem [shape: f32[32,8], index: 0, kind: input, shape index: {}]
  %s1 = inlined_call_operand.vmem [shape: f32[2,32], index: 1, kind: input, shape index: {}]
  %s2 = inlined_call_operand.vmem [shape: f32[4,1,8], index: 2, kind: input, shape index: {}]
  %s3 = inlined_call_operand.vmem [shape: f32[2,8,24], index: 3, kind: input, shape index: {}]
  %s4 = inlined_call_operand.vmem [shape: f32[2,1,24], index: 4, kind: input, shape index: {}]
  %s5 = inlined_call_operand.vmem [shape: f32[2,2,4,8], index: 5, kind: input, shape index: {}]
  %s6 = inlined_call_operand.vmem [shape: f32[2,1,8], index: 6, kind: input, shape index: {}]
  %s7 = inlined_call_operand.vmem [shape: f32[8,32], index: 7, kind: input, shape index: {}]
  %s8 = inlined_call_operand.vmem [shape: f32[1,32], index: 8, kind: input, shape index: {}]
  %s9 = inlined_call_operand.vmem [shape: f32[32,16], index: 9, kind: input, shape index: {}]
  %s10 = inlined_call_operand.vmem [shape: f32[1,16], index: 10, kind: input, shape index: {}]
  %s11 = inlined_call_operand.vmem [shape: f32[16,8], index: 11, kind: input, shape index: {}]
  %s12 = inlined_call_operand.vmem [shape: f32[1,8], index: 12, kind: input, shape index: {}]
  %s13 = inlined_call_operand.vmem [shape: f32[32,1], index: 13, kind: input, shape index: {}]
  %s14 = inlined_call_operand.vmem [shape: f32[16,1], index: 14, kind: input, shape index: {}]
  %s15 = inlined_call_operand.vmem [shape: f32[8,1], index: 15, kind: input, shape index: {}]
  %s16 = inlined_call_operand.<no memory space> [shape: f32[1,1], index: 16, kind: input, shape index: {}]
  %s17 = inlined_call_operand.vmem [shape: f32[2,1], index: 17, kind: output, shape index: {}]
  %s18 = sld [smem:[#allocation0]]
  $region78: #{hyena_graphsage_forward.2} parent=0
    _
  %s20 = ssub.s32 1, %s18
  %s21 = scalar_select 0, %s20, %s18
  %v22 = vstv %s16
  %23 = vst [vmem:[#allocation2] sm:$0x1] %v22
  // Predicated region
  $region2: #{hyena_graphsage_forward.2} parent=0 // pred_check
    _
  $region3: #{hyena_graphsage_forward.2} parent=0 // pred_check_branch
    %25 = sbr.rel (0) target = $region5
  $region4: #{hyena_graphsage_forward.2} parent=0 // pred_region
    _
  $region5: #{hyena_graphsage_forward.2} parent=0 // pred_fallthru
    _
  // Predicated region
  $region6: #{hyena_graphsage_forward.2} parent=0 // pred_check
    _
  $region7: #{hyena_graphsage_forward.2} parent=0 // pred_check_branch
    %27 = sbr.rel (0) target = $region9
  $region8: #{hyena_graphsage_forward.2} parent=0 // pred_region
    _
  $region9: #{hyena_graphsage_forward.2} parent=0 // pred_fallthru
    _
  // Predicated region
  $region10: #{hyena_graphsage_forward.2} parent=0 // pred_check
    _
  $region11: #{hyena_graphsage_forward.2} parent=0 // pred_check_branch
    %29 = sbr.rel (0) target = $region13
  $region12: #{hyena_graphsage_forward.2} parent=0 // pred_region
    _
  $region13: #{hyena_graphsage_forward.2} parent=0 // pred_fallthru
    _
  // Predicated region
  $region14: #{hyena_graphsage_forward.2} parent=0 // pred_check
    _
  $region15: #{hyena_graphsage_forward.2} parent=0 // pred_check_branch
    %31 = sbr.rel (0) target = $region17
  $region16: #{hyena_graphsage_forward.2} parent=0 // pred_region
    _
  $region17: #{hyena_graphsage_forward.2} parent=0 // pred_fallthru
    _
  // Predicated region
  $region18: #{hyena_graphsage_forward.2} parent=0 // pred_check
    _
  $region19: #{hyena_graphsage_forward.2} parent=0 // pred_check_branch
    %33 = sbr.rel (0) target = $region21
  $region20: #{hyena_graphsage_forward.2} parent=0 // pred_region
    _
  $region21: #{hyena_graphsage_forward.2} parent=0 // pred_fallthru
    _
  // Predicated region
  $region22: #{hyena_graphsage_forward.2} parent=0 // pred_check
    _
  $region23: #{hyena_graphsage_forward.2} parent=0 // pred_check_branch
    %35 = sbr.rel (0) target = $region25
  $region24: #{hyena_graphsage_forward.2} parent=0 // pred_region
    _
  $region25: #{hyena_graphsage_forward.2} parent=0 // pred_fallthru
    _
  // Predicated region
  $region26: #{hyena_graphsage_forward.2} parent=0 // pred_check
    _
  $region27: #{hyena_graphsage_forward.2} parent=0 // pred_check_branch
    %37 = sbr.rel (0) target = $region29
  $region28: #{hyena_graphsage_forward.2} parent=0 // pred_region
    _
  $region29: #{hyena_graphsage_forward.2} parent=0 // pred_fallthru
    _
  // Predicated region
  $region30: #{hyena_graphsage_forward.2} parent=0 // pred_check
    _
  $region31: #{hyena_graphsage_forward.2} parent=0 // pred_check_branch
    %39 = sbr.rel (0) target = $region33
  $region32: #{hyena_graphsage_forward.2} parent=0 // pred_region
    _
  $region33: #{hyena_graphsage_forward.2} parent=0 // pred_fallthru
    _
  // Predicated region
  $region34: #{hyena_graphsage_forward.2} parent=0 // pred_check
    _
  $region35: #{hyena_graphsage_forward.2} parent=0 // pred_check_branch
    %41 = sbr.rel (0) target = $region37
  $region36: #{hyena_graphsage_forward.2} parent=0 // pred_region
    _
  $region37: #{hyena_graphsage_forward.2} parent=0 // pred_fallthru
    _
  // Predicated region
  $region38: #{hyena_graphsage_forward.2} parent=0 // pred_check
    _
  $region39: #{hyena_graphsage_forward.2} parent=0 // pred_check_branch
    %43 = sbr.rel (0) target = $region41
  $region40: #{hyena_graphsage_forward.2} parent=0 // pred_region
    _
  $region41: #{hyena_graphsage_forward.2} parent=0 // pred_fallthru
    _
  // Predicated region
  $region42: #{hyena_graphsage_forward.2} parent=0 // pred_check
    _
  $region43: #{hyena_graphsage_forward.2} parent=0 // pred_check_branch
    %45 = sbr.rel (0) target = $region45
  $region44: #{hyena_graphsage_forward.2} parent=0 // pred_region
    _
  $region45: #{hyena_graphsage_forward.2} parent=0 // pred_fallthru
    _
  // Predicated region
  $region46: #{hyena_graphsage_forward.2} parent=0 // pred_check
    _
  $region47: #{hyena_graphsage_forward.2} parent=0 // pred_check_branch
    %47 = sbr.rel (0) target = $region49
  $region48: #{hyena_graphsage_forward.2} parent=0 // pred_region
    _
  $region49: #{hyena_graphsage_forward.2} parent=0 // pred_fallthru
    _
  // Predicated region
  $region50: #{hyena_graphsage_forward.2} parent=0 // pred_check
    _
  $region51: #{hyena_graphsage_forward.2} parent=0 // pred_check_branch
    %49 = sbr.rel (0) target = $region53
  $region52: #{hyena_graphsage_forward.2} parent=0 // pred_region
    _
  $region53: #{hyena_graphsage_forward.2} parent=0 // pred_fallthru
    _
  // Predicated region
  $region54: #{hyena_graphsage_forward.2} parent=0 // pred_check
    _
  $region55: #{hyena_graphsage_forward.2} parent=0 // pred_check_branch
    %51 = sbr.rel (0) target = $region57
  $region56: #{hyena_graphsage_forward.2} parent=0 // pred_region
    _
  $region57: #{hyena_graphsage_forward.2} parent=0 // pred_fallthru
    _
  // Predicated region
  $region58: #{hyena_graphsage_forward.2} parent=0 // pred_check
    _
  $region59: #{hyena_graphsage_forward.2} parent=0 // pred_check_branch
    %53 = sbr.rel (0) target = $region61
  $region60: #{hyena_graphsage_forward.2} parent=0 // pred_region
    _
  $region61: #{hyena_graphsage_forward.2} parent=0 // pred_fallthru
    _
  // Predicated region
  $region62: #{hyena_graphsage_forward.2} parent=0 // pred_check
    _
  $region63: #{hyena_graphsage_forward.2} parent=0 // pred_check_branch
    %55 = sbr.rel (0) target = $region65
  $region64: #{hyena_graphsage_forward.2} parent=0 // pred_region
    _
  $region65: #{hyena_graphsage_forward.2} parent=0 // pred_fallthru
    _
  // Predicated region
  $region66: #{hyena_graphsage_forward.2} parent=0 // pred_check
    _
  $region67: #{hyena_graphsage_forward.2} parent=0 // pred_check_branch
    %57 = sbr.rel (0) target = $region69
  $region68: #{hyena_graphsage_forward.2} parent=0 // pred_region
    _
  $region69: #{hyena_graphsage_forward.2} parent=0 // pred_fallthru
    _
  %v58 = vld [vmem:[%s0] sm:$0xff]
  %v59 = vld [vmem:[%s0 + $0x8] sm:$0xff]
  %v60 = vld [vmem:[%s0 + $0x10] sm:$0xff]
  %v61 = vld [vmem:[%s0 + $0x18] sm:$0xff]
  %v62 = vld [vmem:[%s2] sm:$0x1]
  %v63 = vld [vmem:[%s2 + $0x1] sm:$0x1]
  %v64 = vld [vmem:[%s2 + $0x2] sm:$0x1]
  %v65 = vld [vmem:[%s2 + $0x3] sm:$0x1]
  %v66 = vld [vmem:[%s3] sm:$0xff]
  %v67 = vld [vmem:[%s4] sm:$0x1]
  %v68 = vld [vmem:[%s6] sm:$0x1]
  %v70 = vperm.slane %v67, 0
  %vm72 = vcmask 64512
  %v74 = vsel %vm72, %v58, 0
  %v77 = vsel %vm72, %v59, 0
  %v80 = vsel %vm72, %v60, 0
  %v83 = vsel %vm72, %v61, 0
  %85 = vmatpush.msra.mxu0 0.0
  %86 = vmatpush.msra.mxu0 0.0
  %87 = vmatpush.msra.mxu0 0.0
  %88 = vmatpush.msra.mxu0 0.0
  %89 = vmatpush.msra.mxu0 0.0
  %90 = vmatpush.msra.mxu0 0.0
  %91 = vmatpush.msra.mxu0 0.0
  %92 = vmatpush.msra.mxu0 0.0
  %93 = vmatpush.msra.mxu0 0.0
  %94 = vmatpush.msra.mxu0 0.0
  %95 = vmatpush.msra.mxu0 0.0
  %96 = vmatpush.msra.mxu0 0.0
  %97 = vmatpush.msra.mxu0 0.0
  %98 = vmatpush.msra.mxu0 0.0
  %99 = vmatpush.msra.mxu0 0.0
  %100 = vmatpush.msra.mxu0 %v66
  %101 = vmatmul.f32.gmra.mxu0 %v74
  %v102 = vpop.f32.mrf.mxu0
  %v103 = vadd.f32 %v70, %v102
  %104 = vmatmul.f32.gmra.mxu0 %v77
  %v105 = vpop.f32.mrf.mxu0
  %v106 = vadd.f32 %v70, %v105
  %107 = vmatmul.f32.gmra.mxu0 %v80
  %v108 = vpop.f32.mrf.mxu0
  %v109 = vadd.f32 %v70, %v108
  %110 = vmatmul.f32.gmra.mxu0 %v83
  %v111 = vpop.f32.mrf.mxu0
  %v112 = vadd.f32 %v70, %v111
  %113 = vdwg.mxu0
  %v114 = vmul.f32 %v103, 0.5
  %v115 = vmul.f32 %v106, 0.5
  %v116 = vmul.f32 %v109, 0.5
  %v117 = vmul.f32 %v112, 0.5
  %v122 = vperm.slane %v62, 0
  %v123 = vperm.slane %v63, 0
  %v124 = vperm.slane %v64, 0
  %v125 = vperm.slane %v65, 0
  %131 = vrot.lane.b32.xlu0 %v103, 120
  %v132 = vpop.permute.xlu0 %131
  %vm133 = vcmask 31744
  %v135 = vsel %vm133, %v114, 0
  %v137 = vsel %vm133, %v132, 0
  %139 = vmatpush.xpose.msra.mxu0 0.0
  %140 = vmatpush.xpose.msra.mxu0 0.0
  %141 = vmatpush.xpose.msra.mxu0 0.0
  %142 = vmatpush.xpose.msra.mxu0 0.0
  %143 = vmatpush.xpose.msra.mxu0 0.0
  %144 = vmatpush.xpose.msra.mxu0 0.0
  %145 = vmatpush.xpose.msra.mxu0 0.0
  %146 = vmatpush.xpose.msra.mxu0 0.0
  %147 = vmatpush.xpose.msra.mxu0 0.0
  %148 = vmatpush.xpose.msra.mxu0 0.0
  %149 = vmatpush.xpose.msra.mxu0 0.0
  %150 = vmatpush.xpose.msra.mxu0 0.0
  %151 = vmatpush.xpose.msra.mxu0 0.0
  %152 = vmatpush.xpose.msra.mxu0 0.0
  %153 = vmatpush.xpose.msra.mxu0 0.0
  %154 = vmatpush.xpose.msra.mxu0 %v137
  %155 = vmatmul.f32.gmra.mxu0 %v135
  %v156 = vpop.f32.mrf.mxu0
  %v157 = vadd.f32 %v122, %v156
  %158 = vdwg.mxu0
  %160 = vrot.lane.b32.xlu0 %v106, 120
  %v161 = vpop.permute.xlu0 %160
  %v163 = vsel %vm133, %v115, 0
  %v165 = vsel %vm133, %v161, 0
  %167 = vmatpush.xpose.msra.mxu0 0.0
  %168 = vmatpush.xpose.msra.mxu0 0.0
  %169 = vmatpush.xpose.msra.mxu0 0.0
  %170 = vmatpush.xpose.msra.mxu0 0.0
  %171 = vmatpush.xpose.msra.mxu0 0.0
  %172 = vmatpush.xpose.msra.mxu0 0.0
  %173 = vmatpush.xpose.msra.mxu0 0.0
  %174 = vmatpush.xpose.msra.mxu0 0.0
  %175 = vmatpush.xpose.msra.mxu0 0.0
  %176 = vmatpush.xpose.msra.mxu0 0.0
  %177 = vmatpush.xpose.msra.mxu0 0.0
  %178 = vmatpush.xpose.msra.mxu0 0.0
  %179 = vmatpush.xpose.msra.mxu0 0.0
  %180 = vmatpush.xpose.msra.mxu0 0.0
  %181 = vmatpush.xpose.msra.mxu0 0.0
  %182 = vmatpush.xpose.msra.mxu0 %v165
  %183 = vmatmul.f32.gmra.mxu0 %v163
  %v184 = vpop.f32.mrf.mxu0
  %v185 = vadd.f32 %v123, %v184
  %186 = vdwg.mxu0
  %188 = vrot.lane.b32.xlu0 %v109, 120
  %v189 = vpop.permute.xlu0 %188
  %v191 = vsel %vm133, %v116, 0
  %v193 = vsel %vm133, %v189, 0
  %195 = vmatpush.xpose.msra.mxu0 0.0
  %196 = vmatpush.xpose.msra.mxu0 0.0
  %197 = vmatpush.xpose.msra.mxu0 0.0
  %198 = vmatpush.xpose.msra.mxu0 0.0
  %199 = vmatpush.xpose.msra.mxu0 0.0
  %200 = vmatpush.xpose.msra.mxu0 0.0
  %201 = vmatpush.xpose.msra.mxu0 0.0
  %202 = vmatpush.xpose.msra.mxu0 0.0
  %203 = vmatpush.xpose.msra.mxu0 0.0
  %204 = vmatpush.xpose.msra.mxu0 0.0
  %205 = vmatpush.xpose.msra.mxu0 0.0
  %206 = vmatpush.xpose.msra.mxu0 0.0
  %207 = vmatpush.xpose.msra.mxu0 0.0
  %208 = vmatpush.xpose.msra.mxu0 0.0
  %209 = vmatpush.xpose.msra.mxu0 0.0
  %210 = vmatpush.xpose.msra.mxu0 %v193
  %211 = vmatmul.f32.gmra.mxu0 %v191
  %v212 = vpop.f32.mrf.mxu0
  %v213 = vadd.f32 %v124, %v212
  %214 = vdwg.mxu0
  %216 = vrot.lane.b32.xlu0 %v112, 120
  %v217 = vpop.permute.xlu0 %216
  %v219 = vsel %vm133, %v117, 0
  %v221 = vsel %vm133, %v217, 0
  %223 = vmatpush.xpose.msra.mxu0 0.0
  %224 = vmatpush.xpose.msra.mxu0 0.0
  %225 = vmatpush.xpose.msra.mxu0 0.0
  %226 = vmatpush.xpose.msra.mxu0 0.0
  %227 = vmatpush.xpose.msra.mxu0 0.0
  %228 = vmatpush.xpose.msra.mxu0 0.0
  %229 = vmatpush.xpose.msra.mxu0 0.0
  %230 = vmatpush.xpose.msra.mxu0 0.0
  %231 = vmatpush.xpose.msra.mxu0 0.0
  %232 = vmatpush.xpose.msra.mxu0 0.0
  %233 = vmatpush.xpose.msra.mxu0 0.0
  %234 = vmatpush.xpose.msra.mxu0 0.0
  %235 = vmatpush.xpose.msra.mxu0 0.0
  %236 = vmatpush.xpose.msra.mxu0 0.0
  %237 = vmatpush.xpose.msra.mxu0 0.0
  %238 = vmatpush.xpose.msra.mxu0 %v221
  %239 = vmatmul.f32.gmra.mxu0 %v219
  %v240 = vpop.f32.mrf.mxu0
  %v241 = vadd.f32 %v125, %v240
  %242 = vdwg.mxu0
  %v243 = vsel %vm72, %v157, -inf
  %244 = vmax.xlane.f32.xlu0 %v243
  %v245 = vpop.xlane.xlu0 %244
  %v246 = vsel %vm72, %v185, -inf
  %247 = vmax.xlane.f32.xlu0 %v246
  %v248 = vpop.xlane.xlu0 %247
  %v249 = vsel %vm72, %v213, -inf
  %250 = vmax.xlane.f32.xlu0 %v249
  %v251 = vpop.xlane.xlu0 %250
  %v252 = vsel %vm72, %v241, -inf
  %253 = vmax.xlane.f32.xlu0 %v252
  %v254 = vpop.xlane.xlu0 %253
  %v255 = vsub.f32 %v157, %v245
  %v256 = vsub.f32 %v185, %v248
  %v257 = vsub.f32 %v213, %v251
  %v258 = vsub.f32 %v241, %v254
  %v259 = vmul.f32 %v255, 1.442695
  %v260 = vpow.pop %v259
  %v261 = vmul.f32 %v256, 1.442695
  %v262 = vpow.pop %v261
  %v263 = vmul.f32 %v257, 1.442695
  %v264 = vpow.pop %v263
  %v265 = vmul.f32 %v258, 1.442695
  %v266 = vpow.pop %v265
  %v267 = vsel %vm72, %v260, 0.0
  %268 = vadd.xlane.f32.xlu0 %v267
  %v269 = vpop.xlane.xlu0 %268
  %v270 = vsel %vm72, %v262, 0.0
  %271 = vadd.xlane.f32.xlu0 %v270
  %v272 = vpop.xlane.xlu0 %271
  %v273 = vsel %vm72, %v264, 0.0
  %274 = vadd.xlane.f32.xlu0 %v273
  %v275 = vpop.xlane.xlu0 %274
  %v276 = vsel %vm72, %v266, 0.0
  %277 = vadd.xlane.f32.xlu0 %v276
  %v278 = vpop.xlane.xlu0 %277
  %v279 = vrcp.pop %v269
  %v280 = vrcp.pop %v272
  %v281 = vrcp.pop %v275
  %v282 = vrcp.pop %v278
  %v283 = vmul.f32 %v260, %v279
  %v284 = vmul.f32 %v262, %v280
  %v285 = vmul.f32 %v264, %v281
  %v286 = vmul.f32 %v266, %v282
  %287 = vrot.lane.b32.xlu0 %v103, 112
  %v288 = vpop.permute.xlu0 %287
  %v291 = vsel %vm72, %v283, 0
  %293 = vmatpush.msra.mxu0 0.0
  %294 = vmatpush.msra.mxu0 0.0
  %295 = vmatpush.msra.mxu0 0.0
  %296 = vmatpush.msra.mxu0 0.0
  %297 = vmatpush.msra.mxu0 0.0
  %298 = vmatpush.msra.mxu0 0.0
  %299 = vmatpush.msra.mxu0 0.0
  %300 = vmatpush.msra.mxu0 0.0
  %301 = vmatpush.msra.mxu0 0.0
  %302 = vmatpush.msra.mxu0 0.0
  %303 = vmatpush.msra.mxu0 0.0
  %304 = vmatpush.msra.mxu0 0.0
  %305 = vmatpush.msra.mxu0 0.0
  %306 = vmatpush.msra.mxu0 0.0
  %307 = vmatpush.msra.mxu0 0.0
  %308 = vmatpush.msra.mxu0 %v288
  %309 = vmatmul.f32.gmra.mxu0 %v291
  %v310 = vpop.f32.mrf.mxu0
  %v311 = vadd.f32 0.0, %v310
  %312 = vdwg.mxu0
  %313 = vrot.lane.b32.xlu0 %v106, 112
  %v314 = vpop.permute.xlu0 %313
  %v317 = vsel %vm72, %v284, 0
  %319 = vmatpush.msra.mxu0 0.0
  %320 = vmatpush.msra.mxu0 0.0
  %321 = vmatpush.msra.mxu0 0.0
  %322 = vmatpush.msra.mxu0 0.0
  %323 = vmatpush.msra.mxu0 0.0
  %324 = vmatpush.msra.mxu0 0.0
  %325 = vmatpush.msra.mxu0 0.0
  %326 = vmatpush.msra.mxu0 0.0
  %327 = vmatpush.msra.mxu0 0.0
  %328 = vmatpush.msra.mxu0 0.0
  %329 = vmatpush.msra.mxu0 0.0
  %330 = vmatpush.msra.mxu0 0.0
  %331 = vmatpush.msra.mxu0 0.0
  %332 = vmatpush.msra.mxu0 0.0
  %333 = vmatpush.msra.mxu0 0.0
  %334 = vmatpush.msra.mxu0 %v314
  %335 = vmatmul.f32.gmra.mxu0 %v317
  %v336 = vpop.f32.mrf.mxu0
  %v337 = vadd.f32 0.0, %v336
  %338 = vdwg.mxu0
  %339 = vrot.lane.b32.xlu0 %v109, 112
  %v340 = vpop.permute.xlu0 %339
  %v343 = vsel %vm72, %v285, 0
  %345 = vmatpush.msra.mxu0 0.0
  %346 = vmatpush.msra.mxu0 0.0
  %347 = vmatpush.msra.mxu0 0.0
  %348 = vmatpush.msra.mxu0 0.0
  %349 = vmatpush.msra.mxu0 0.0
  %350 = vmatpush.msra.mxu0 0.0
  %351 = vmatpush.msra.mxu0 0.0
  %352 = vmatpush.msra.mxu0 0.0
  %353 = vmatpush.msra.mxu0 0.0
  %354 = vmatpush.msra.mxu0 0.0
  %355 = vmatpush.msra.mxu0 0.0
  %356 = vmatpush.msra.mxu0 0.0
  %357 = vmatpush.msra.mxu0 0.0
  %358 = vmatpush.msra.mxu0 0.0
  %359 = vmatpush.msra.mxu0 0.0
  %360 = vmatpush.msra.mxu0 %v340
  %361 = vmatmul.f32.gmra.mxu0 %v343
  %v362 = vpop.f32.mrf.mxu0
  %v363 = vadd.f32 0.0, %v362
  %364 = vdwg.mxu0
  %365 = vrot.lane.b32.xlu0 %v112, 112
  %v366 = vpop.permute.xlu0 %365
  %v369 = vsel %vm72, %v286, 0
  %371 = vmatpush.msra.mxu0 0.0
  %372 = vmatpush.msra.mxu0 0.0
  %373 = vmatpush.msra.mxu0 0.0
  %374 = vmatpush.msra.mxu0 0.0
  %375 = vmatpush.msra.mxu0 0.0
  %376 = vmatpush.msra.mxu0 0.0
  %377 = vmatpush.msra.mxu0 0.0
  %378 = vmatpush.msra.mxu0 0.0
  %379 = vmatpush.msra.mxu0 0.0
  %380 = vmatpush.msra.mxu0 0.0
  %381 = vmatpush.msra.mxu0 0.0
  %382 = vmatpush.msra.mxu0 0.0
  %383 = vmatpush.msra.mxu0 0.0
  %384 = vmatpush.msra.mxu0 0.0
  %385 = vmatpush.msra.mxu0 0.0
  %386 = vmatpush.msra.mxu0 %v366
  %387 = vmatmul.f32.gmra.mxu0 %v369
  %v388 = vpop.f32.mrf.mxu0
  %v389 = vadd.f32 0.0, %v388
  %390 = vdwg.mxu0
  %v391 = vld [vmem:[%s5] sm:$0xf]
  %392 = vrot.lane.b32.xlu0 %v114, 124
  %v393 = vpop.permute.xlu0 %392
  %394 = vrot.lane.b32.xlu0 %v103, 116
  %v395 = vpop.permute.xlu0 %394
  %v396 = vsel %vm133, %v393, 0
  %v398 = vsel %vm133, %v395, 0
  %400 = vmatpush.xpose.msra.mxu0 0.0
  %401 = vmatpush.xpose.msra.mxu0 0.0
  %402 = vmatpush.xpose.msra.mxu0 0.0
  %403 = vmatpush.xpose.msra.mxu0 0.0
  %404 = vmatpush.xpose.msra.mxu0 0.0
  %405 = vmatpush.xpose.msra.mxu0 0.0
  %406 = vmatpush.xpose.msra.mxu0 0.0
  %407 = vmatpush.xpose.msra.mxu0 0.0
  %408 = vmatpush.xpose.msra.mxu0 0.0
  %409 = vmatpush.xpose.msra.mxu0 0.0
  %410 = vmatpush.xpose.msra.mxu0 0.0
  %411 = vmatpush.xpose.msra.mxu0 0.0
  %412 = vmatpush.xpose.msra.mxu0 0.0
  %413 = vmatpush.xpose.msra.mxu0 0.0
  %414 = vmatpush.xpose.msra.mxu0 0.0
  %415 = vmatpush.xpose.msra.mxu0 %v398
  %416 = vmatmul.f32.gmra.mxu0 %v396
  %v417 = vpop.f32.mrf.mxu0
  %v418 = vadd.f32 %v122, %v417
  %419 = vdwg.mxu0
  %420 = vrot.lane.b32.xlu0 %v115, 124
  %v421 = vpop.permute.xlu0 %420
  %422 = vrot.lane.b32.xlu0 %v106, 116
  %v423 = vpop.permute.xlu0 %422
  %v424 = vsel %vm133, %v421, 0
  %v426 = vsel %vm133, %v423, 0
  %428 = vmatpush.xpose.msra.mxu0 0.0
  %429 = vmatpush.xpose.msra.mxu0 0.0
  %430 = vmatpush.xpose.msra.mxu0 0.0
  %431 = vmatpush.xpose.msra.mxu0 0.0
  %432 = vmatpush.xpose.msra.mxu0 0.0
  %433 = vmatpush.xpose.msra.mxu0 0.0
  %434 = vmatpush.xpose.msra.mxu0 0.0
  %435 = vmatpush.xpose.msra.mxu0 0.0
  %436 = vmatpush.xpose.msra.mxu0 0.0
  %437 = vmatpush.xpose.msra.mxu0 0.0
  %438 = vmatpush.xpose.msra.mxu0 0.0
  %439 = vmatpush.xpose.msra.mxu0 0.0
  %440 = vmatpush.xpose.msra.mxu0 0.0
  %441 = vmatpush.xpose.msra.mxu0 0.0
  %442 = vmatpush.xpose.msra.mxu0 0.0
  %443 = vmatpush.xpose.msra.mxu0 %v426
  %444 = vmatmul.f32.gmra.mxu0 %v424
  %v445 = vpop.f32.mrf.mxu0
  %v446 = vadd.f32 %v123, %v445
  %447 = vdwg.mxu0
  %448 = vrot.lane.b32.xlu0 %v116, 124
  %v449 = vpop.permute.xlu0 %448
  %450 = vrot.lane.b32.xlu0 %v109, 116
  %v451 = vpop.permute.xlu0 %450
  %v452 = vsel %vm133, %v449, 0
  %v454 = vsel %vm133, %v451, 0
  %456 = vmatpush.xpose.msra.mxu0 0.0
  %457 = vmatpush.xpose.msra.mxu0 0.0
  %458 = vmatpush.xpose.msra.mxu0 0.0
  %459 = vmatpush.xpose.msra.mxu0 0.0
  %460 = vmatpush.xpose.msra.mxu0 0.0
  %461 = vmatpush.xpose.msra.mxu0 0.0
  %462 = vmatpush.xpose.msra.mxu0 0.0
  %463 = vmatpush.xpose.msra.mxu0 0.0
  %464 = vmatpush.xpose.msra.mxu0 0.0
  %465 = vmatpush.xpose.msra.mxu0 0.0
  %466 = vmatpush.xpose.msra.mxu0 0.0
  %467 = vmatpush.xpose.msra.mxu0 0.0
  %468 = vmatpush.xpose.msra.mxu0 0.0
  %469 = vmatpush.xpose.msra.mxu0 0.0
  %470 = vmatpush.xpose.msra.mxu0 0.0
  %471 = vmatpush.xpose.msra.mxu0 %v454
  %472 = vmatmul.f32.gmra.mxu0 %v452
  %v473 = vpop.f32.mrf.mxu0
  %v474 = vadd.f32 %v124, %v473
  %475 = vdwg.mxu0
  %476 = vrot.lane.b32.xlu0 %v117, 124
  %v477 = vpop.permute.xlu0 %476
  %478 = vrot.lane.b32.xlu0 %v112, 116
  %v479 = vpop.permute.xlu0 %478
  %v480 = vsel %vm133, %v477, 0
  %v482 = vsel %vm133, %v479, 0
  %484 = vmatpush.xpose.msra.mxu0 0.0
  %485 = vmatpush.xpose.msra.mxu0 0.0
  %486 = vmatpush.xpose.msra.mxu0 0.0
  %487 = vmatpush.xpose.msra.mxu0 0.0
  %488 = vmatpush.xpose.msra.mxu0 0.0
  %489 = vmatpush.xpose.msra.mxu0 0.0
  %490 = vmatpush.xpose.msra.mxu0 0.0
  %491 = vmatpush.xpose.msra.mxu0 0.0
  %492 = vmatpush.xpose.msra.mxu0 0.0
  %493 = vmatpush.xpose.msra.mxu0 0.0
  %494 = vmatpush.xpose.msra.mxu0 0.0
  %495 = vmatpush.xpose.msra.mxu0 0.0
  %496 = vmatpush.xpose.msra.mxu0 0.0
  %497 = vmatpush.xpose.msra.mxu0 0.0
  %498 = vmatpush.xpose.msra.mxu0 0.0
  %499 = vmatpush.xpose.msra.mxu0 %v482
  %500 = vmatmul.f32.gmra.mxu0 %v480
  %v501 = vpop.f32.mrf.mxu0
  %v502 = vadd.f32 %v125, %v501
  %503 = vdwg.mxu0
  %v504 = vsel %vm72, %v418, -inf
  %505 = vmax.xlane.f32.xlu0 %v504
  %v506 = vpop.xlane.xlu0 %505
  %v507 = vsel %vm72, %v446, -inf
  %508 = vmax.xlane.f32.xlu0 %v507
  %v509 = vpop.xlane.xlu0 %508
  %v510 = vsel %vm72, %v474, -inf
  %511 = vmax.xlane.f32.xlu0 %v510
  %v512 = vpop.xlane.xlu0 %511
  %v513 = vsel %vm72, %v502, -inf
  %514 = vmax.xlane.f32.xlu0 %v513
  %v515 = vpop.xlane.xlu0 %514
  %v516 = vsub.f32 %v418, %v506
  %v517 = vsub.f32 %v446, %v509
  %v518 = vsub.f32 %v474, %v512
  %v519 = vsub.f32 %v502, %v515
  %v520 = vmul.f32 %v516, 1.442695
  %v521 = vpow.pop %v520
  %v522 = vmul.f32 %v517, 1.442695
  %v523 = vpow.pop %v522
  %v524 = vmul.f32 %v518, 1.442695
  %v525 = vpow.pop %v524
  %v526 = vmul.f32 %v519, 1.442695
  %v527 = vpow.pop %v526
  %v528 = vsel %vm72, %v521, 0.0
  %529 = vadd.xlane.f32.xlu0 %v528
  %v530 = vpop.xlane.xlu0 %529
  %v531 = vsel %vm72, %v523, 0.0
  %532 = vadd.xlane.f32.xlu0 %v531
  %v533 = vpop.xlane.xlu0 %532
  %v534 = vsel %vm72, %v525, 0.0
  %535 = vadd.xlane.f32.xlu0 %v534
  %v536 = vpop.xlane.xlu0 %535
  %v537 = vsel %vm72, %v527, 0.0
  %538 = vadd.xlane.f32.xlu0 %v537
  %v539 = vpop.xlane.xlu0 %538
  %v540 = vrcp.pop %v530
  %v541 = vrcp.pop %v533
  %v542 = vrcp.pop %v536
  %v543 = vrcp.pop %v539
  %v544 = vmul.f32 %v521, %v540
  %v545 = vmul.f32 %v523, %v541
  %v546 = vmul.f32 %v525, %v542
  %v547 = vmul.f32 %v527, %v543
  %548 = vrot.lane.b32.xlu0 %v103, 108
  %v549 = vpop.permute.xlu0 %548
  %v552 = vsel %vm72, %v544, 0
  %554 = vmatpush.msra.mxu0 0.0
  %555 = vmatpush.msra.mxu0 0.0
  %556 = vmatpush.msra.mxu0 0.0
  %557 = vmatpush.msra.mxu0 0.0
  %558 = vmatpush.msra.mxu0 0.0
  %559 = vmatpush.msra.mxu0 0.0
  %560 = vmatpush.msra.mxu0 0.0
  %561 = vmatpush.msra.mxu0 0.0
  %562 = vmatpush.msra.mxu0 0.0
  %563 = vmatpush.msra.mxu0 0.0
  %564 = vmatpush.msra.mxu0 0.0
  %565 = vmatpush.msra.mxu0 0.0
  %566 = vmatpush.msra.mxu0 0.0
  %567 = vmatpush.msra.mxu0 0.0
  %568 = vmatpush.msra.mxu0 0.0
  %569 = vmatpush.msra.mxu0 %v549
  %570 = vmatmul.f32.gmra.mxu0 %v552
  %v571 = vpop.f32.mrf.mxu0
  %v572 = vadd.f32 0.0, %v571
  %573 = vdwg.mxu0
  %574 = vrot.lane.b32.xlu0 %v106, 108
  %v575 = vpop.permute.xlu0 %574
  %v578 = vsel %vm72, %v545, 0
  %580 = vmatpush.msra.mxu0 0.0
  %581 = vmatpush.msra.mxu0 0.0
  %582 = vmatpush.msra.mxu0 0.0
  %583 = vmatpush.msra.mxu0 0.0
  %584 = vmatpush.msra.mxu0 0.0
  %585 = vmatpush.msra.mxu0 0.0
  %586 = vmatpush.msra.mxu0 0.0
  %587 = vmatpush.msra.mxu0 0.0
  %588 = vmatpush.msra.mxu0 0.0
  %589 = vmatpush.msra.mxu0 0.0
  %590 = vmatpush.msra.mxu0 0.0
  %591 = vmatpush.msra.mxu0 0.0
  %592 = vmatpush.msra.mxu0 0.0
  %593 = vmatpush.msra.mxu0 0.0
  %594 = vmatpush.msra.mxu0 0.0
  %595 = vmatpush.msra.mxu0 %v575
  %596 = vmatmul.f32.gmra.mxu0 %v578
  %v597 = vpop.f32.mrf.mxu0
  %v598 = vadd.f32 0.0, %v597
  %599 = vdwg.mxu0
  %600 = vrot.lane.b32.xlu0 %v109, 108
  %v601 = vpop.permute.xlu0 %600
  %v604 = vsel %vm72, %v546, 0
  %606 = vmatpush.msra.mxu0 0.0
  %607 = vmatpush.msra.mxu0 0.0
  %608 = vmatpush.msra.mxu0 0.0
  %609 = vmatpush.msra.mxu0 0.0
  %610 = vmatpush.msra.mxu0 0.0
  %611 = vmatpush.msra.mxu0 0.0
  %612 = vmatpush.msra.mxu0 0.0
  %613 = vmatpush.msra.mxu0 0.0
  %614 = vmatpush.msra.mxu0 0.0
  %615 = vmatpush.msra.mxu0 0.0
  %616 = vmatpush.msra.mxu0 0.0
  %617 = vmatpush.msra.mxu0 0.0
  %618 = vmatpush.msra.mxu0 0.0
  %619 = vmatpush.msra.mxu0 0.0
  %620 = vmatpush.msra.mxu0 0.0
  %621 = vmatpush.msra.mxu0 %v601
  %622 = vmatmul.f32.gmra.mxu0 %v604
  %v623 = vpop.f32.mrf.mxu0
  %v624 = vadd.f32 0.0, %v623
  %625 = vdwg.mxu0
  %626 = vrot.lane.b32.xlu0 %v112, 108
  %v627 = vpop.permute.xlu0 %626
  %v630 = vsel %vm72, %v547, 0
  %632 = vmatpush.msra.mxu0 0.0
  %633 = vmatpush.msra.mxu0 0.0
  %634 = vmatpush.msra.mxu0 0.0
  %635 = vmatpush.msra.mxu0 0.0
  %636 = vmatpush.msra.mxu0 0.0
  %637 = vmatpush.msra.mxu0 0.0
  %638 = vmatpush.msra.mxu0 0.0
  %639 = vmatpush.msra.mxu0 0.0
  %640 = vmatpush.msra.mxu0 0.0
  %641 = vmatpush.msra.mxu0 0.0
  %642 = vmatpush.msra.mxu0 0.0
  %643 = vmatpush.msra.mxu0 0.0
  %644 = vmatpush.msra.mxu0 0.0
  %645 = vmatpush.msra.mxu0 0.0
  %646 = vmatpush.msra.mxu0 0.0
  %647 = vmatpush.msra.mxu0 %v627
  %648 = vmatmul.f32.gmra.mxu0 %v630
  %v649 = vpop.f32.mrf.mxu0
  %v650 = vadd.f32 0.0, %v649
  %651 = vdwg.mxu0
  %s652 = scalar_lea.vmem %s5, 4
  %v653 = vld [vmem:[%s652] sm:$0xf]
  %v655 = vsel %vm133, %v572, 0
  %v658 = vsel %vm133, %v598, 0
  %v661 = vsel %vm133, %v624, 0
  %v664 = vsel %vm133, %v650, 0
  %vm666 = vcmask 1043456
  %v668 = vsel %vm666, %v653, 0
  %670 = vmatpush.msra.mxu0 0.0
  %671 = vmatpush.msra.mxu0 0.0
  %672 = vmatpush.msra.mxu0 0.0
  %673 = vmatpush.msra.mxu0 0.0
  %674 = vmatpush.msra.mxu0 0.0
  %675 = vmatpush.msra.mxu0 0.0
  %676 = vmatpush.msra.mxu0 0.0
  %677 = vmatpush.msra.mxu0 0.0
  %678 = vmatpush.msra.mxu0 0.0
  %679 = vmatpush.msra.mxu0 0.0
  %680 = vmatpush.msra.mxu0 0.0
  %681 = vmatpush.msra.mxu0 0.0
  %682 = vmatpush.msra.mxu0 0.0
  %683 = vmatpush.msra.mxu0 0.0
  %684 = vmatpush.msra.mxu0 0.0
  %685 = vmatpush.msra.mxu0 %v668
  %686 = vmatmul.f32.gmra.mxu0 %v655
  %v687 = vpop.f32.mrf.mxu0
  %v688 = vadd.f32 0.0, %v687
  %689 = vmatmul.f32.gmra.mxu0 %v658
  %v690 = vpop.f32.mrf.mxu0
  %v691 = vadd.f32 0.0, %v690
  %692 = vmatmul.f32.gmra.mxu0 %v661
  %v693 = vpop.f32.mrf.mxu0
  %v694 = vadd.f32 0.0, %v693
  %695 = vmatmul.f32.gmra.mxu0 %v664
  %v696 = vpop.f32.mrf.mxu0
  %v697 = vadd.f32 0.0, %v696
  %698 = vdwg.mxu0
  %v700 = vsel %vm133, %v311, 0
  %v703 = vsel %vm133, %v337, 0
  %v706 = vsel %vm133, %v363, 0
  %v709 = vsel %vm133, %v389, 0
  %v712 = vsel %vm666, %v391, 0
  %714 = vmatpush.msra.mxu0 0.0
  %715 = vmatpush.msra.mxu0 0.0
  %716 = vmatpush.msra.mxu0 0.0
  %717 = vmatpush.msra.mxu0 0.0
  %718 = vmatpush.msra.mxu0 0.0
  %719 = vmatpush.msra.mxu0 0.0
  %720 = vmatpush.msra.mxu0 0.0
  %721 = vmatpush.msra.mxu0 0.0
  %722 = vmatpush.msra.mxu0 0.0
  %723 = vmatpush.msra.mxu0 0.0
  %724 = vmatpush.msra.mxu0 0.0
  %725 = vmatpush.msra.mxu0 0.0
  %726 = vmatpush.msra.mxu0 0.0
  %727 = vmatpush.msra.mxu0 0.0
  %728 = vmatpush.msra.mxu0 0.0
  %729 = vmatpush.msra.mxu0 %v712
  %730 = vmatmul.f32.gmra.mxu0 %v700
  %v731 = vpop.f32.mrf.mxu0
  %v732 = vadd.f32 %v688, %v731
  %733 = vmatmul.f32.gmra.mxu0 %v703
  %v734 = vpop.f32.mrf.mxu0
  %v735 = vadd.f32 %v691, %v734
  %736 = vmatmul.f32.gmra.mxu0 %v706
  %v737 = vpop.f32.mrf.mxu0
  %v738 = vadd.f32 %v694, %v737
  %739 = vmatmul.f32.gmra.mxu0 %v709
  %v740 = vpop.f32.mrf.mxu0
  %v741 = vadd.f32 %v697, %v740
  %742 = vdwg.mxu0
  %v743 = vadd.f32 %v58, %v732
  %v744 = vadd.f32 %v59, %v735
  %v745 = vadd.f32 %v60, %v738
  %v746 = vadd.f32 %v61, %v741
  %v748 = vperm.slane %v68, 0
  %v750 = vadd.f32 %v743, %v748
  %v751 = vadd.f32 %v744, %v748
  %v752 = vadd.f32 %v745, %v748
  %v753 = vadd.f32 %v746, %v748
  %s754 = scalar_lea.vmem %s3, 8
  %v755 = vld [vmem:[%s754] sm:$0xff]
  %s756 = scalar_lea.vmem %s4, 1
  %v757 = vld [vmem:[%s756] sm:$0x1]
  %s758 = scalar_lea.vmem %s6, 1
  %v759 = vld [vmem:[%s758] sm:$0x1]
  %v761 = vperm.slane %v757, 0
  %v764 = vsel %vm72, %v750, 0
  %v767 = vsel %vm72, %v751, 0
  %v770 = vsel %vm72, %v752, 0
  %v773 = vsel %vm72, %v753, 0
  %775 = vmatpush.msra.mxu0 0.0
  %776 = vmatpush.msra.mxu0 0.0
  %777 = vmatpush.msra.mxu0 0.0
  %778 = vmatpush.msra.mxu0 0.0
  %779 = vmatpush.msra.mxu0 0.0
  %780 = vmatpush.msra.mxu0 0.0
  %781 = vmatpush.msra.mxu0 0.0
  %782 = vmatpush.msra.mxu0 0.0
  %783 = vmatpush.msra.mxu0 0.0
  %784 = vmatpush.msra.mxu0 0.0
  %785 = vmatpush.msra.mxu0 0.0
  %786 = vmatpush.msra.mxu0 0.0
  %787 = vmatpush.msra.mxu0 0.0
  %788 = vmatpush.msra.mxu0 0.0
  %789 = vmatpush.msra.mxu0 0.0
  %790 = vmatpush.msra.mxu0 %v755
  %791 = vmatmul.f32.gmra.mxu0 %v764
  %v792 = vpop.f32.mrf.mxu0
  %v793 = vadd.f32 %v761, %v792
  %794 = vmatmul.f32.gmra.mxu0 %v767
  %v795 = vpop.f32.mrf.mxu0
  %v796 = vadd.f32 %v761, %v795
  %797 = vmatmul.f32.gmra.mxu0 %v770
  %v798 = vpop.f32.mrf.mxu0
  %v799 = vadd.f32 %v761, %v798
  %800 = vmatmul.f32.gmra.mxu0 %v773
  %v801 = vpop.f32.mrf.mxu0
  %v802 = vadd.f32 %v761, %v801
  %803 = vdwg.mxu0
  %v804 = vmul.f32 %v793, 0.5
  %v805 = vmul.f32 %v796, 0.5
  %v806 = vmul.f32 %v799, 0.5
  %v807 = vmul.f32 %v802, 0.5
  %809 = vrot.lane.b32.xlu0 %v793, 120
  %v810 = vpop.permute.xlu0 %809
  %v812 = vsel %vm133, %v804, 0
  %v814 = vsel %vm133, %v810, 0
  %816 = vmatpush.xpose.msra.mxu0 0.0
  %817 = vmatpush.xpose.msra.mxu0 0.0
  %818 = vmatpush.xpose.msra.mxu0 0.0
  %819 = vmatpush.xpose.msra.mxu0 0.0
  %820 = vmatpush.xpose.msra.mxu0 0.0
  %821 = vmatpush.xpose.msra.mxu0 0.0
  %822 = vmatpush.xpose.msra.mxu0 0.0
  %823 = vmatpush.xpose.msra.mxu0 0.0
  %824 = vmatpush.xpose.msra.mxu0 0.0
  %825 = vmatpush.xpose.msra.mxu0 0.0
  %826 = vmatpush.xpose.msra.mxu0 0.0
  %827 = vmatpush.xpose.msra.mxu0 0.0
  %828 = vmatpush.xpose.msra.mxu0 0.0
  %829 = vmatpush.xpose.msra.mxu0 0.0
  %830 = vmatpush.xpose.msra.mxu0 0.0
  %831 = vmatpush.xpose.msra.mxu0 %v814
  %832 = vmatmul.f32.gmra.mxu0 %v812
  %v833 = vpop.f32.mrf.mxu0
  %v834 = vadd.f32 %v122, %v833
  %835 = vdwg.mxu0
  %837 = vrot.lane.b32.xlu0 %v796, 120
  %v838 = vpop.permute.xlu0 %837
  %v840 = vsel %vm133, %v805, 0
  %v842 = vsel %vm133, %v838, 0
  %844 = vmatpush.xpose.msra.mxu0 0.0
  %845 = vmatpush.xpose.msra.mxu0 0.0
  %846 = vmatpush.xpose.msra.mxu0 0.0
  %847 = vmatpush.xpose.msra.mxu0 0.0
  %848 = vmatpush.xpose.msra.mxu0 0.0
  %849 = vmatpush.xpose.msra.mxu0 0.0
  %850 = vmatpush.xpose.msra.mxu0 0.0
  %851 = vmatpush.xpose.msra.mxu0 0.0
  %852 = vmatpush.xpose.msra.mxu0 0.0
  %853 = vmatpush.xpose.msra.mxu0 0.0
  %854 = vmatpush.xpose.msra.mxu0 0.0
  %855 = vmatpush.xpose.msra.mxu0 0.0
  %856 = vmatpush.xpose.msra.mxu0 0.0
  %857 = vmatpush.xpose.msra.mxu0 0.0
  %858 = vmatpush.xpose.msra.mxu0 0.0
  %859 = vmatpush.xpose.msra.mxu0 %v842
  %860 = vmatmul.f32.gmra.mxu0 %v840
  %v861 = vpop.f32.mrf.mxu0
  %v862 = vadd.f32 %v123, %v861
  %863 = vdwg.mxu0
  %865 = vrot.lane.b32.xlu0 %v799, 120
  %v866 = vpop.permute.xlu0 %865
  %v868 = vsel %vm133, %v806, 0
  %v870 = vsel %vm133, %v866, 0
  %872 = vmatpush.xpose.msra.mxu0 0.0
  %873 = vmatpush.xpose.msra.mxu0 0.0
  %874 = vmatpush.xpose.msra.mxu0 0.0
  %875 = vmatpush.xpose.msra.mxu0 0.0
  %876 = vmatpush.xpose.msra.mxu0 0.0
  %877 = vmatpush.xpose.msra.mxu0 0.0
  %878 = vmatpush.xpose.msra.mxu0 0.0
  %879 = vmatpush.xpose.msra.mxu0 0.0
  %880 = vmatpush.xpose.msra.mxu0 0.0
  %881 = vmatpush.xpose.msra.mxu0 0.0
  %882 = vmatpush.xpose.msra.mxu0 0.0
  %883 = vmatpush.xpose.msra.mxu0 0.0
  %884 = vmatpush.xpose.msra.mxu0 0.0
  %885 = vmatpush.xpose.msra.mxu0 0.0
  %886 = vmatpush.xpose.msra.mxu0 0.0
  %887 = vmatpush.xpose.msra.mxu0 %v870
  %888 = vmatmul.f32.gmra.mxu0 %v868
  %v889 = vpop.f32.mrf.mxu0
  %v890 = vadd.f32 %v124, %v889
  %891 = vdwg.mxu0
  %893 = vrot.lane.b32.xlu0 %v802, 120
  %v894 = vpop.permute.xlu0 %893
  %v896 = vsel %vm133, %v807, 0
  %v898 = vsel %vm133, %v894, 0
  %900 = vmatpush.xpose.msra.mxu0 0.0
  %901 = vmatpush.xpose.msra.mxu0 0.0
  %902 = vmatpush.xpose.msra.mxu0 0.0
  %903 = vmatpush.xpose.msra.mxu0 0.0
  %904 = vmatpush.xpose.msra.mxu0 0.0
  %905 = vmatpush.xpose.msra.mxu0 0.0
  %906 = vmatpush.xpose.msra.mxu0 0.0
  %907 = vmatpush.xpose.msra.mxu0 0.0
  %908 = vmatpush.xpose.msra.mxu0 0.0
  %909 = vmatpush.xpose.msra.mxu0 0.0
  %910 = vmatpush.xpose.msra.mxu0 0.0
  %911 = vmatpush.xpose.msra.mxu0 0.0
  %912 = vmatpush.xpose.msra.mxu0 0.0
  %913 = vmatpush.xpose.msra.mxu0 0.0
  %914 = vmatpush.xpose.msra.mxu0 0.0
  %915 = vmatpush.xpose.msra.mxu0 %v898
  %916 = vmatmul.f32.gmra.mxu0 %v896
  %v917 = vpop.f32.mrf.mxu0
  %v918 = vadd.f32 %v125, %v917
  %919 = vdwg.mxu0
  %v920 = vsel %vm72, %v834, -inf
  %921 = vmax.xlane.f32.xlu0 %v920
  %v922 = vpop.xlane.xlu0 %921
  %v923 = vsel %vm72, %v862, -inf
  %924 = vmax.xlane.f32.xlu0 %v923
  %v925 = vpop.xlane.xlu0 %924
  %v926 = vsel %vm72, %v890, -inf
  %927 = vmax.xlane.f32.xlu0 %v926
  %v928 = vpop.xlane.xlu0 %927
  %v929 = vsel %vm72, %v918, -inf
  %930 = vmax.xlane.f32.xlu0 %v929
  %v931 = vpop.xlane.xlu0 %930
  %v932 = vsub.f32 %v834, %v922
  %v933 = vsub.f32 %v862, %v925
  %v934 = vsub.f32 %v890, %v928
  %v935 = vsub.f32 %v918, %v931
  %v936 = vmul.f32 %v932, 1.442695
  %v937 = vpow.pop %v936
  %v938 = vmul.f32 %v933, 1.442695
  %v939 = vpow.pop %v938
  %v940 = vmul.f32 %v934, 1.442695
  %v941 = vpow.pop %v940
  %v942 = vmul.f32 %v935, 1.442695
  %v943 = vpow.pop %v942
  %v944 = vsel %vm72, %v937, 0.0
  %945 = vadd.xlane.f32.xlu0 %v944
  %v946 = vpop.xlane.xlu0 %945
  %v947 = vsel %vm72, %v939, 0.0
  %948 = vadd.xlane.f32.xlu0 %v947
  %v949 = vpop.xlane.xlu0 %948
  %v950 = vsel %vm72, %v941, 0.0
  %951 = vadd.xlane.f32.xlu0 %v950
  %v952 = vpop.xlane.xlu0 %951
  %v953 = vsel %vm72, %v943, 0.0
  %954 = vadd.xlane.f32.xlu0 %v953
  %v955 = vpop.xlane.xlu0 %954
  %v956 = vrcp.pop %v946
  %v957 = vrcp.pop %v949
  %v958 = vrcp.pop %v952
  %v959 = vrcp.pop %v955
  %v960 = vmul.f32 %v937, %v956
  %v961 = vmul.f32 %v939, %v957
  %v962 = vmul.f32 %v941, %v958
  %v963 = vmul.f32 %v943, %v959
  %964 = vrot.lane.b32.xlu0 %v793, 112
  %v965 = vpop.permute.xlu0 %964
  %v968 = vsel %vm72, %v960, 0
  %970 = vmatpush.msra.mxu0 0.0
  %971 = vmatpush.msra.mxu0 0.0
  %972 = vmatpush.msra.mxu0 0.0
  %973 = vmatpush.msra.mxu0 0.0
  %974 = vmatpush.msra.mxu0 0.0
  %975 = vmatpush.msra.mxu0 0.0
  %976 = vmatpush.msra.mxu0 0.0
  %977 = vmatpush.msra.mxu0 0.0
  %978 = vmatpush.msra.mxu0 0.0
  %979 = vmatpush.msra.mxu0 0.0
  %980 = vmatpush.msra.mxu0 0.0
  %981 = vmatpush.msra.mxu0 0.0
  %982 = vmatpush.msra.mxu0 0.0
  %983 = vmatpush.msra.mxu0 0.0
  %984 = vmatpush.msra.mxu0 0.0
  %985 = vmatpush.msra.mxu0 %v965
  %986 = vmatmul.f32.gmra.mxu0 %v968
  %v987 = vpop.f32.mrf.mxu0
  %v988 = vadd.f32 0.0, %v987
  %989 = vdwg.mxu0
  %990 = vrot.lane.b32.xlu0 %v796, 112
  %v991 = vpop.permute.xlu0 %990
  %v994 = vsel %vm72, %v961, 0
  %996 = vmatpush.msra.mxu0 0.0
  %997 = vmatpush.msra.mxu0 0.0
  %998 = vmatpush.msra.mxu0 0.0
  %999 = vmatpush.msra.mxu0 0.0
  %1000 = vmatpush.msra.mxu0 0.0
  %1001 = vmatpush.msra.mxu0 0.0
  %1002 = vmatpush.msra.mxu0 0.0
  %1003 = vmatpush.msra.mxu0 0.0
  %1004 = vmatpush.msra.mxu0 0.0
  %1005 = vmatpush.msra.mxu0 0.0
  %1006 = vmatpush.msra.mxu0 0.0
  %1007 = vmatpush.msra.mxu0 0.0
  %1008 = vmatpush.msra.mxu0 0.0
  %1009 = vmatpush.msra.mxu0 0.0
  %1010 = vmatpush.msra.mxu0 0.0
  %1011 = vmatpush.msra.mxu0 %v991
  %1012 = vmatmul.f32.gmra.mxu0 %v994
  %v1013 = vpop.f32.mrf.mxu0
  %v1014 = vadd.f32 0.0, %v1013
  %1015 = vdwg.mxu0
  %1016 = vrot.lane.b32.xlu0 %v799, 112
  %v1017 = vpop.permute.xlu0 %1016
  %v1020 = vsel %vm72, %v962, 0
  %1022 = vmatpush.msra.mxu0 0.0
  %1023 = vmatpush.msra.mxu0 0.0
  %1024 = vmatpush.msra.mxu0 0.0
  %1025 = vmatpush.msra.mxu0 0.0
  %1026 = vmatpush.msra.mxu0 0.0
  %1027 = vmatpush.msra.mxu0 0.0
  %1028 = vmatpush.msra.mxu0 0.0
  %1029 = vmatpush.msra.mxu0 0.0
  %1030 = vmatpush.msra.mxu0 0.0
  %1031 = vmatpush.msra.mxu0 0.0
  %1032 = vmatpush.msra.mxu0 0.0
  %1033 = vmatpush.msra.mxu0 0.0
  %1034 = vmatpush.msra.mxu0 0.0
  %1035 = vmatpush.msra.mxu0 0.0
  %1036 = vmatpush.msra.mxu0 0.0
  %1037 = vmatpush.msra.mxu0 %v1017
  %1038 = vmatmul.f32.gmra.mxu0 %v1020
  %v1039 = vpop.f32.mrf.mxu0
  %v1040 = vadd.f32 0.0, %v1039
  %1041 = vdwg.mxu0
  %1042 = vrot.lane.b32.xlu0 %v802, 112
  %v1043 = vpop.permute.xlu0 %1042
  %v1046 = vsel %vm72, %v963, 0
  %1048 = vmatpush.msra.mxu0 0.0
  %1049 = vmatpush.msra.mxu0 0.0
  %1050 = vmatpush.msra.mxu0 0.0
  %1051 = vmatpush.msra.mxu0 0.0
  %1052 = vmatpush.msra.mxu0 0.0
  %1053 = vmatpush.msra.mxu0 0.0
  %1054 = vmatpush.msra.mxu0 0.0
  %1055 = vmatpush.msra.mxu0 0.0
  %1056 = vmatpush.msra.mxu0 0.0
  %1057 = vmatpush.msra.mxu0 0.0
  %1058 = vmatpush.msra.mxu0 0.0
  %1059 = vmatpush.msra.mxu0 0.0
  %1060 = vmatpush.msra.mxu0 0.0
  %1061 = vmatpush.msra.mxu0 0.0
  %1062 = vmatpush.msra.mxu0 0.0
  %1063 = vmatpush.msra.mxu0 %v1043
  %1064 = vmatmul.f32.gmra.mxu0 %v1046
  %v1065 = vpop.f32.mrf.mxu0
  %v1066 = vadd.f32 0.0, %v1065
  %1067 = vdwg.mxu0
  %s1068 = scalar_lea.vmem %s5, 8
  %v1069 = vld [vmem:[%s1068] sm:$0xf]
  %1070 = vrot.lane.b32.xlu0 %v804, 124
  %v1071 = vpop.permute.xlu0 %1070
  %1072 = vrot.lane.b32.xlu0 %v793, 116
  %v1073 = vpop.permute.xlu0 %1072
  %v1074 = vsel %vm133, %v1071, 0
  %v1076 = vsel %vm133, %v1073, 0
  %1078 = vmatpush.xpose.msra.mxu0 0.0
  %1079 = vmatpush.xpose.msra.mxu0 0.0
  %1080 = vmatpush.xpose.msra.mxu0 0.0
  %1081 = vmatpush.xpose.msra.mxu0 0.0
  %1082 = vmatpush.xpose.msra.mxu0 0.0
  %1083 = vmatpush.xpose.msra.mxu0 0.0
  %1084 = vmatpush.xpose.msra.mxu0 0.0
  %1085 = vmatpush.xpose.msra.mxu0 0.0
  %1086 = vmatpush.xpose.msra.mxu0 0.0
  %1087 = vmatpush.xpose.msra.mxu0 0.0
  %1088 = vmatpush.xpose.msra.mxu0 0.0
  %1089 = vmatpush.xpose.msra.mxu0 0.0
  %1090 = vmatpush.xpose.msra.mxu0 0.0
  %1091 = vmatpush.xpose.msra.mxu0 0.0
  %1092 = vmatpush.xpose.msra.mxu0 0.0
  %1093 = vmatpush.xpose.msra.mxu0 %v1076
  %1094 = vmatmul.f32.gmra.mxu0 %v1074
  %v1095 = vpop.f32.mrf.mxu0
  %v1096 = vadd.f32 %v122, %v1095
  %1097 = vdwg.mxu0
  %1098 = vrot.lane.b32.xlu0 %v805, 124
  %v1099 = vpop.permute.xlu0 %1098
  %1100 = vrot.lane.b32.xlu0 %v796, 116
  %v1101 = vpop.permute.xlu0 %1100
  %v1102 = vsel %vm133, %v1099, 0
  %v1104 = vsel %vm133, %v1101, 0
  %1106 = vmatpush.xpose.msra.mxu0 0.0
  %1107 = vmatpush.xpose.msra.mxu0 0.0
  %1108 = vmatpush.xpose.msra.mxu0 0.0
  %1109 = vmatpush.xpose.msra.mxu0 0.0
  %1110 = vmatpush.xpose.msra.mxu0 0.0
  %1111 = vmatpush.xpose.msra.mxu0 0.0
  %1112 = vmatpush.xpose.msra.mxu0 0.0
  %1113 = vmatpush.xpose.msra.mxu0 0.0
  %1114 = vmatpush.xpose.msra.mxu0 0.0
  %1115 = vmatpush.xpose.msra.mxu0 0.0
  %1116 = vmatpush.xpose.msra.mxu0 0.0
  %1117 = vmatpush.xpose.msra.mxu0 0.0
  %1118 = vmatpush.xpose.msra.mxu0 0.0
  %1119 = vmatpush.xpose.msra.mxu0 0.0
  %1120 = vmatpush.xpose.msra.mxu0 0.0
  %1121 = vmatpush.xpose.msra.mxu0 %v1104
  %1122 = vmatmul.f32.gmra.mxu0 %v1102
  %v1123 = vpop.f32.mrf.mxu0
  %v1124 = vadd.f32 %v123, %v1123
  %1125 = vdwg.mxu0
  %1126 = vrot.lane.b32.xlu0 %v806, 124
  %v1127 = vpop.permute.xlu0 %1126
  %1128 = vrot.lane.b32.xlu0 %v799, 116
  %v1129 = vpop.permute.xlu0 %1128
  %v1130 = vsel %vm133, %v1127, 0
  %v1132 = vsel %vm133, %v1129, 0
  %1134 = vmatpush.xpose.msra.mxu0 0.0
  %1135 = vmatpush.xpose.msra.mxu0 0.0
  %1136 = vmatpush.xpose.msra.mxu0 0.0
  %1137 = vmatpush.xpose.msra.mxu0 0.0
  %1138 = vmatpush.xpose.msra.mxu0 0.0
  %1139 = vmatpush.xpose.msra.mxu0 0.0
  %1140 = vmatpush.xpose.msra.mxu0 0.0
  %1141 = vmatpush.xpose.msra.mxu0 0.0
  %1142 = vmatpush.xpose.msra.mxu0 0.0
  %1143 = vmatpush.xpose.msra.mxu0 0.0
  %1144 = vmatpush.xpose.msra.mxu0 0.0
  %1145 = vmatpush.xpose.msra.mxu0 0.0
  %1146 = vmatpush.xpose.msra.mxu0 0.0
  %1147 = vmatpush.xpose.msra.mxu0 0.0
  %1148 = vmatpush.xpose.msra.mxu0 0.0
  %1149 = vmatpush.xpose.msra.mxu0 %v1132
  %1150 = vmatmul.f32.gmra.mxu0 %v1130
  %v1151 = vpop.f32.mrf.mxu0
  %v1152 = vadd.f32 %v124, %v1151
  %1153 = vdwg.mxu0
  %1154 = vrot.lane.b32.xlu0 %v807, 124
  %v1155 = vpop.permute.xlu0 %1154
  %1156 = vrot.lane.b32.xlu0 %v802, 116
  %v1157 = vpop.permute.xlu0 %1156
  %v1158 = vsel %vm133, %v1155, 0
  %v1160 = vsel %vm133, %v1157, 0
  %1162 = vmatpush.xpose.msra.mxu0 0.0
  %1163 = vmatpush.xpose.msra.mxu0 0.0
  %1164 = vmatpush.xpose.msra.mxu0 0.0
  %1165 = vmatpush.xpose.msra.mxu0 0.0
  %1166 = vmatpush.xpose.msra.mxu0 0.0
  %1167 = vmatpush.xpose.msra.mxu0 0.0
  %1168 = vmatpush.xpose.msra.mxu0 0.0
  %1169 = vmatpush.xpose.msra.mxu0 0.0
  %1170 = vmatpush.xpose.msra.mxu0 0.0
  %1171 = vmatpush.xpose.msra.mxu0 0.0
  %1172 = vmatpush.xpose.msra.mxu0 0.0
  %1173 = vmatpush.xpose.msra.mxu0 0.0
  %1174 = vmatpush.xpose.msra.mxu0 0.0
  %1175 = vmatpush.xpose.msra.mxu0 0.0
  %1176 = vmatpush.xpose.msra.mxu0 0.0
  %1177 = vmatpush.xpose.msra.mxu0 %v1160
  %1178 = vmatmul.f32.gmra.mxu0 %v1158
  %v1179 = vpop.f32.mrf.mxu0
  %v1180 = vadd.f32 %v125, %v1179
  %1181 = vdwg.mxu0
  %v1182 = vsel %vm72, %v1096, -inf
  %1183 = vmax.xlane.f32.xlu0 %v1182
  %v1184 = vpop.xlane.xlu0 %1183
  %v1185 = vsel %vm72, %v1124, -inf
  %1186 = vmax.xlane.f32.xlu0 %v1185
  %v1187 = vpop.xlane.xlu0 %1186
  %v1188 = vsel %vm72, %v1152, -inf
  %1189 = vmax.xlane.f32.xlu0 %v1188
  %v1190 = vpop.xlane.xlu0 %1189
  %v1191 = vsel %vm72, %v1180, -inf
  %1192 = vmax.xlane.f32.xlu0 %v1191
  %v1193 = vpop.xlane.xlu0 %1192
  %v1194 = vsub.f32 %v1096, %v1184
  %v1195 = vsub.f32 %v1124, %v1187
  %v1196 = vsub.f32 %v1152, %v1190
  %v1197 = vsub.f32 %v1180, %v1193
  %v1198 = vmul.f32 %v1194, 1.442695
  %v1199 = vpow.pop %v1198
  %v1200 = vmul.f32 %v1195, 1.442695
  %v1201 = vpow.pop %v1200
  %v1202 = vmul.f32 %v1196, 1.442695
  %v1203 = vpow.pop %v1202
  %v1204 = vmul.f32 %v1197, 1.442695
  %v1205 = vpow.pop %v1204
  %v1206 = vsel %vm72, %v1199, 0.0
  %1207 = vadd.xlane.f32.xlu0 %v1206
  %v1208 = vpop.xlane.xlu0 %1207
  %v1209 = vsel %vm72, %v1201, 0.0
  %1210 = vadd.xlane.f32.xlu0 %v1209
  %v1211 = vpop.xlane.xlu0 %1210
  %v1212 = vsel %vm72, %v1203, 0.0
  %1213 = vadd.xlane.f32.xlu0 %v1212
  %v1214 = vpop.xlane.xlu0 %1213
  %v1215 = vsel %vm72, %v1205, 0.0
  %1216 = vadd.xlane.f32.xlu0 %v1215
  %v1217 = vpop.xlane.xlu0 %1216
  %v1218 = vrcp.pop %v1208
  %v1219 = vrcp.pop %v1211
  %v1220 = vrcp.pop %v1214
  %v1221 = vrcp.pop %v1217
  %v1222 = vmul.f32 %v1199, %v1218
  %v1223 = vmul.f32 %v1201, %v1219
  %v1224 = vmul.f32 %v1203, %v1220
  %v1225 = vmul.f32 %v1205, %v1221
  %1226 = vrot.lane.b32.xlu0 %v793, 108
  %v1227 = vpop.permute.xlu0 %1226
  %v1230 = vsel %vm72, %v1222, 0
  %1232 = vmatpush.msra.mxu0 0.0
  %1233 = vmatpush.msra.mxu0 0.0
  %1234 = vmatpush.msra.mxu0 0.0
  %1235 = vmatpush.msra.mxu0 0.0
  %1236 = vmatpush.msra.mxu0 0.0
  %1237 = vmatpush.msra.mxu0 0.0
  %1238 = vmatpush.msra.mxu0 0.0
  %1239 = vmatpush.msra.mxu0 0.0
  %1240 = vmatpush.msra.mxu0 0.0
  %1241 = vmatpush.msra.mxu0 0.0
  %1242 = vmatpush.msra.mxu0 0.0
  %1243 = vmatpush.msra.mxu0 0.0
  %1244 = vmatpush.msra.mxu0 0.0
  %1245 = vmatpush.msra.mxu0 0.0
  %1246 = vmatpush.msra.mxu0 0.0
  %1247 = vmatpush.msra.mxu0 %v1227
  %1248 = vmatmul.f32.gmra.mxu0 %v1230
  %v1249 = vpop.f32.mrf.mxu0
  %v1250 = vadd.f32 0.0, %v1249
  %1251 = vdwg.mxu0
  %1252 = vrot.lane.b32.xlu0 %v796, 108
  %v1253 = vpop.permute.xlu0 %1252
  %v1256 = vsel %vm72, %v1223, 0
  %1258 = vmatpush.msra.mxu0 0.0
  %1259 = vmatpush.msra.mxu0 0.0
  %1260 = vmatpush.msra.mxu0 0.0
  %1261 = vmatpush.msra.mxu0 0.0
  %1262 = vmatpush.msra.mxu0 0.0
  %1263 = vmatpush.msra.mxu0 0.0
  %1264 = vmatpush.msra.mxu0 0.0
  %1265 = vmatpush.msra.mxu0 0.0
  %1266 = vmatpush.msra.mxu0 0.0
  %1267 = vmatpush.msra.mxu0 0.0
  %1268 = vmatpush.msra.mxu0 0.0
  %1269 = vmatpush.msra.mxu0 0.0
  %1270 = vmatpush.msra.mxu0 0.0
  %1271 = vmatpush.msra.mxu0 0.0
  %1272 = vmatpush.msra.mxu0 0.0
  %1273 = vmatpush.msra.mxu0 %v1253
  %1274 = vmatmul.f32.gmra.mxu0 %v1256
  %v1275 = vpop.f32.mrf.mxu0
  %v1276 = vadd.f32 0.0, %v1275
  %1277 = vdwg.mxu0
  %1278 = vrot.lane.b32.xlu0 %v799, 108
  %v1279 = vpop.permute.xlu0 %1278
  %v1282 = vsel %vm72, %v1224, 0
  %1284 = vmatpush.msra.mxu0 0.0
  %1285 = vmatpush.msra.mxu0 0.0
  %1286 = vmatpush.msra.mxu0 0.0
  %1287 = vmatpush.msra.mxu0 0.0
  %1288 = vmatpush.msra.mxu0 0.0
  %1289 = vmatpush.msra.mxu0 0.0
  %1290 = vmatpush.msra.mxu0 0.0
  %1291 = vmatpush.msra.mxu0 0.0
  %1292 = vmatpush.msra.mxu0 0.0
  %1293 = vmatpush.msra.mxu0 0.0
  %1294 = vmatpush.msra.mxu0 0.0
  %1295 = vmatpush.msra.mxu0 0.0
  %1296 = vmatpush.msra.mxu0 0.0
  %1297 = vmatpush.msra.mxu0 0.0
  %1298 = vmatpush.msra.mxu0 0.0
  %1299 = vmatpush.msra.mxu0 %v1279
  %1300 = vmatmul.f32.gmra.mxu0 %v1282
  %v1301 = vpop.f32.mrf.mxu0
  %v1302 = vadd.f32 0.0, %v1301
  %1303 = vdwg.mxu0
  %1304 = vrot.lane.b32.xlu0 %v802, 108
  %v1305 = vpop.permute.xlu0 %1304
  %v1308 = vsel %vm72, %v1225, 0
  %1310 = vmatpush.msra.mxu0 0.0
  %1311 = vmatpush.msra.mxu0 0.0
  %1312 = vmatpush.msra.mxu0 0.0
  %1313 = vmatpush.msra.mxu0 0.0
  %1314 = vmatpush.msra.mxu0 0.0
  %1315 = vmatpush.msra.mxu0 0.0
  %1316 = vmatpush.msra.mxu0 0.0
  %1317 = vmatpush.msra.mxu0 0.0
  %1318 = vmatpush.msra.mxu0 0.0
  %1319 = vmatpush.msra.mxu0 0.0
  %1320 = vmatpush.msra.mxu0 0.0
  %1321 = vmatpush.msra.mxu0 0.0
  %1322 = vmatpush.msra.mxu0 0.0
  %1323 = vmatpush.msra.mxu0 0.0
  %1324 = vmatpush.msra.mxu0 0.0
  %1325 = vmatpush.msra.mxu0 %v1305
  %1326 = vmatmul.f32.gmra.mxu0 %v1308
  %v1327 = vpop.f32.mrf.mxu0
  %v1328 = vadd.f32 0.0, %v1327
  %1329 = vdwg.mxu0
  %s1330 = scalar_lea.vmem %s5, 12
  %v1331 = vld [vmem:[%s1330] sm:$0xf]
  %v1333 = vsel %vm133, %v1250, 0
  %v1336 = vsel %vm133, %v1276, 0
  %v1339 = vsel %vm133, %v1302, 0
  %v1342 = vsel %vm133, %v1328, 0
  %v1345 = vsel %vm666, %v1331, 0
  %1347 = vmatpush.msra.mxu0 0.0
  %1348 = vmatpush.msra.mxu0 0.0
  %1349 = vmatpush.msra.mxu0 0.0
  %1350 = vmatpush.msra.mxu0 0.0
  %1351 = vmatpush.msra.mxu0 0.0
  %1352 = vmatpush.msra.mxu0 0.0
  %1353 = vmatpush.msra.mxu0 0.0
  %1354 = vmatpush.msra.mxu0 0.0
  %1355 = vmatpush.msra.mxu0 0.0
  %1356 = vmatpush.msra.mxu0 0.0
  %1357 = vmatpush.msra.mxu0 0.0
  %1358 = vmatpush.msra.mxu0 0.0
  %1359 = vmatpush.msra.mxu0 0.0
  %1360 = vmatpush.msra.mxu0 0.0
  %1361 = vmatpush.msra.mxu0 0.0
  %1362 = vmatpush.msra.mxu0 %v1345
  %1363 = vmatmul.f32.gmra.mxu0 %v1333
  %v1364 = vpop.f32.mrf.mxu0
  %v1365 = vadd.f32 0.0, %v1364
  %1366 = vmatmul.f32.gmra.mxu0 %v1336
  %v1367 = vpop.f32.mrf.mxu0
  %v1368 = vadd.f32 0.0, %v1367
  %1369 = vmatmul.f32.gmra.mxu0 %v1339
  %v1370 = vpop.f32.mrf.mxu0
  %v1371 = vadd.f32 0.0, %v1370
  %1372 = vmatmul.f32.gmra.mxu0 %v1342
  %v1373 = vpop.f32.mrf.mxu0
  %v1374 = vadd.f32 0.0, %v1373
  %1375 = vdwg.mxu0
  %v1377 = vsel %vm133, %v988, 0
  %v1380 = vsel %vm133, %v1014, 0
  %v1383 = vsel %vm133, %v1040, 0
  %v1386 = vsel %vm133, %v1066, 0
  %v1389 = vsel %vm666, %v1069, 0
  %1391 = vmatpush.msra.mxu0 0.0
  %1392 = vmatpush.msra.mxu0 0.0
  %1393 = vmatpush.msra.mxu0 0.0
  %1394 = vmatpush.msra.mxu0 0.0
  %1395 = vmatpush.msra.mxu0 0.0
  %1396 = vmatpush.msra.mxu0 0.0
  %1397 = vmatpush.msra.mxu0 0.0
  %1398 = vmatpush.msra.mxu0 0.0
  %1399 = vmatpush.msra.mxu0 0.0
  %1400 = vmatpush.msra.mxu0 0.0
  %1401 = vmatpush.msra.mxu0 0.0
  %1402 = vmatpush.msra.mxu0 0.0
  %1403 = vmatpush.msra.mxu0 0.0
  %1404 = vmatpush.msra.mxu0 0.0
  %1405 = vmatpush.msra.mxu0 0.0
  %1406 = vmatpush.msra.mxu0 %v1389
  %1407 = vmatmul.f32.gmra.mxu0 %v1377
  %v1408 = vpop.f32.mrf.mxu0
  %v1409 = vadd.f32 %v1365, %v1408
  %1410 = vmatmul.f32.gmra.mxu0 %v1380
  %v1411 = vpop.f32.mrf.mxu0
  %v1412 = vadd.f32 %v1368, %v1411
  %1413 = vmatmul.f32.gmra.mxu0 %v1383
  %v1414 = vpop.f32.mrf.mxu0
  %v1415 = vadd.f32 %v1371, %v1414
  %1416 = vmatmul.f32.gmra.mxu0 %v1386
  %v1417 = vpop.f32.mrf.mxu0
  %v1418 = vadd.f32 %v1374, %v1417
  %1419 = vdwg.mxu0
  %v1420 = vadd.f32 %v750, %v1409
  %v1421 = vadd.f32 %v751, %v1412
  %v1422 = vadd.f32 %v752, %v1415
  %v1423 = vadd.f32 %v753, %v1418
  %v1425 = vperm.slane %v759, 0
  %v1427 = vadd.f32 %v1420, %v1425
  %v1428 = vadd.f32 %v1421, %v1425
  %v1429 = vadd.f32 %v1422, %v1425
  %v1430 = vadd.f32 %v1423, %v1425
  %v1431 = vld [vmem:[%s1] sm:$0x3]
  %vm1432 = vcmask 261120
  %v1434 = vsel %vm1432, %v1431, 0
  %1436 = vmatpush.msra.mxu0 0.0
  %1437 = vmatpush.msra.mxu0 0.0
  %1438 = vmatpush.msra.mxu0 0.0
  %1439 = vmatpush.msra.mxu0 0.0
  %1440 = vmatpush.msra.mxu0 0.0
  %1441 = vmatpush.msra.mxu0 0.0
  %1442 = vmatpush.msra.mxu0 0.0
  %1443 = vmatpush.msra.mxu0 0.0
  %1444 = vmatpush.msra.mxu0 0.0
  %1445 = vmatpush.msra.mxu0 0.0
  %1446 = vmatpush.msra.mxu0 0.0
  %1447 = vmatpush.msra.mxu0 0.0
  %1448 = vmatpush.msra.mxu0 %v1430
  %1449 = vmatpush.msra.mxu0 %v1429
  %1450 = vmatpush.msra.mxu0 %v1428
  %1451 = vmatpush.msra.mxu0 %v1427
  %1452 = vmatmul.f32.gmra.mxu0 %v1434
  %v1453 = vpop.f32.mrf.mxu0
  %v1454 = vadd.f32 0.0, %v1453
  %1455 = vdwg.mxu0
  %v1456 = vld [vmem:[%s7] sm:$0xff]
  %v1457 = vld [vmem:[%s8] sm:$0x1]
  %v1459 = vperm.slane %v1457, 0
  %v1462 = vsel %vm72, %v1454, 0
  %1464 = vmatpush.msra.mxu0 0.0
  %1465 = vmatpush.msra.mxu0 0.0
  %1466 = vmatpush.msra.mxu0 0.0
  %1467 = vmatpush.msra.mxu0 0.0
  %1468 = vmatpush.msra.mxu0 0.0
  %1469 = vmatpush.msra.mxu0 0.0
  %1470 = vmatpush.msra.mxu0 0.0
  %1471 = vmatpush.msra.mxu0 0.0
  %1472 = vmatpush.msra.mxu0 0.0
  %1473 = vmatpush.msra.mxu0 0.0
  %1474 = vmatpush.msra.mxu0 0.0
  %1475 = vmatpush.msra.mxu0 0.0
  %1476 = vmatpush.msra.mxu0 0.0
  %1477 = vmatpush.msra.mxu0 0.0
  %1478 = vmatpush.msra.mxu0 0.0
  %1479 = vmatpush.msra.mxu0 %v1456
  %1480 = vmatmul.f32.gmra.mxu0 %v1462
  %v1481 = vpop.f32.mrf.mxu0
  %v1482 = vadd.f32 %v1459, %v1481
  %1483 = vdwg.mxu0
  %v1484 = vmax.f32 %v1482, 0.0
  %v1485 = vld [vmem:[%s9] sm:$0xff]
  %v1486 = vld [vmem:[%s9 + $0x8] sm:$0xff]
  %v1487 = vld [vmem:[%s9 + $0x10] sm:$0xff]
  %v1488 = vld [vmem:[%s9 + $0x18] sm:$0xff]
  %v1489 = vld [vmem:[%s10] sm:$0x1]
  %v1491 = vperm.slane %v1489, 0
  %v1494 = vsel %vm1432, %v1484, 0
  %1496 = vmatpush.msra.mxu0 0.0
  %1497 = vmatpush.msra.mxu0 0.0
  %1498 = vmatpush.msra.mxu0 0.0
  %1499 = vmatpush.msra.mxu0 0.0
  %1500 = vmatpush.msra.mxu0 0.0
  %1501 = vmatpush.msra.mxu0 0.0
  %1502 = vmatpush.msra.mxu0 0.0
  %1503 = vmatpush.msra.mxu0 0.0
  %1504 = vmatpush.msra.mxu0 0.0
  %1505 = vmatpush.msra.mxu0 0.0
  %1506 = vmatpush.msra.mxu0 0.0
  %1507 = vmatpush.msra.mxu0 0.0
  %1508 = vmatpush.msra.mxu0 %v1488
  %1509 = vmatpush.msra.mxu0 %v1487
  %1510 = vmatpush.msra.mxu0 %v1486
  %1511 = vmatpush.msra.mxu0 %v1485
  %1512 = vmatmul.f32.gmra.mxu0 %v1494
  %v1513 = vpop.f32.mrf.mxu0
  %v1514 = vadd.f32 %v1491, %v1513
  %1515 = vdwg.mxu0
  %v1516 = vmax.f32 %v1514, 0.0
  %v1517 = vld [vmem:[%s11] sm:$0xff]
  %v1518 = vld [vmem:[%s11 + $0x8] sm:$0xff]
  %v1519 = vld [vmem:[%s12] sm:$0x1]
  %v1521 = vperm.slane %v1519, 0
  %vm1523 = vcmask 130048
  %v1525 = vsel %vm1523, %v1516, 0
  %1527 = vmatpush.msra.mxu0 0.0
  %1528 = vmatpush.msra.mxu0 0.0
  %1529 = vmatpush.msra.mxu0 0.0
  %1530 = vmatpush.msra.mxu0 0.0
  %1531 = vmatpush.msra.mxu0 0.0
  %1532 = vmatpush.msra.mxu0 0.0
  %1533 = vmatpush.msra.mxu0 0.0
  %1534 = vmatpush.msra.mxu0 0.0
  %1535 = vmatpush.msra.mxu0 0.0
  %1536 = vmatpush.msra.mxu0 0.0
  %1537 = vmatpush.msra.mxu0 0.0
  %1538 = vmatpush.msra.mxu0 0.0
  %1539 = vmatpush.msra.mxu0 0.0
  %1540 = vmatpush.msra.mxu0 0.0
  %1541 = vmatpush.msra.mxu0 %v1518
  %1542 = vmatpush.msra.mxu0 %v1517
  %1543 = vmatmul.f32.gmra.mxu0 %v1525
  %v1544 = vpop.f32.mrf.mxu0
  %v1545 = vadd.f32 %v1521, %v1544
  %1546 = vdwg.mxu0
  %v1547 = vmax.f32 %v1545, 0.0
  %v1548 = vld [vmem:[%s13] sm:$0xff]
  %v1549 = vld [vmem:[%s13 + $0x8] sm:$0xff]
  %v1550 = vld [vmem:[%s13 + $0x10] sm:$0xff]
  %v1551 = vld [vmem:[%s13 + $0x18] sm:$0xff]
  %v1552 = vld [vmem:[%s14] sm:$0xff]
  %v1553 = vld [vmem:[%s14 + $0x8] sm:$0xff]
  %1554 = vmatpush.msra.mxu0 0.0
  %1555 = vmatpush.msra.mxu0 0.0
  %1556 = vmatpush.msra.mxu0 0.0
  %1557 = vmatpush.msra.mxu0 0.0
  %1558 = vmatpush.msra.mxu0 0.0
  %1559 = vmatpush.msra.mxu0 0.0
  %1560 = vmatpush.msra.mxu0 0.0
  %1561 = vmatpush.msra.mxu0 0.0
  %1562 = vmatpush.msra.mxu0 0.0
  %1563 = vmatpush.msra.mxu0 0.0
  %1564 = vmatpush.msra.mxu0 0.0
  %1565 = vmatpush.msra.mxu0 0.0
  %1566 = vmatpush.msra.mxu0 0.0
  %1567 = vmatpush.msra.mxu0 0.0
  %1568 = vmatpush.msra.mxu0 %v1553
  %1569 = vmatpush.msra.mxu0 %v1552
  %1570 = vmatmul.f32.gmra.mxu0 %v1525
  %v1571 = vpop.f32.mrf.mxu0
  %v1572 = vadd.f32 0.0, %v1571
  %1573 = vdwg.mxu0
  %1574 = vmatpush.msra.mxu0 0.0
  %1575 = vmatpush.msra.mxu0 0.0
  %1576 = vmatpush.msra.mxu0 0.0
  %1577 = vmatpush.msra.mxu0 0.0
  %1578 = vmatpush.msra.mxu0 0.0
  %1579 = vmatpush.msra.mxu0 0.0
  %1580 = vmatpush.msra.mxu0 0.0
  %1581 = vmatpush.msra.mxu0 0.0
  %1582 = vmatpush.msra.mxu0 0.0
  %1583 = vmatpush.msra.mxu0 0.0
  %1584 = vmatpush.msra.mxu0 0.0
  %1585 = vmatpush.msra.mxu0 0.0
  %1586 = vmatpush.msra.mxu0 %v1551
  %1587 = vmatpush.msra.mxu0 %v1550
  %1588 = vmatpush.msra.mxu0 %v1549
  %1589 = vmatpush.msra.mxu0 %v1548
  %1590 = vmatmul.f32.gmra.mxu0 %v1494
  %v1591 = vpop.f32.mrf.mxu0
  %v1592 = vadd.f32 %v1572, %v1591
  %1593 = vdwg.mxu0
  %v1594 = vld [vmem:[%s15] sm:$0xff]
  %v1596 = vsel %vm72, %v1547, 0
  %1598 = vmatpush.msra.mxu0 0.0
  %1599 = vmatpush.msra.mxu0 0.0
  %1600 = vmatpush.msra.mxu0 0.0
  %1601 = vmatpush.msra.mxu0 0.0
  %1602 = vmatpush.msra.mxu0 0.0
  %1603 = vmatpush.msra.mxu0 0.0
  %1604 = vmatpush.msra.mxu0 0.0
  %1605 = vmatpush.msra.mxu0 0.0
  %1606 = vmatpush.msra.mxu0 0.0
  %1607 = vmatpush.msra.mxu0 0.0
  %1608 = vmatpush.msra.mxu0 0.0
  %1609 = vmatpush.msra.mxu0 0.0
  %1610 = vmatpush.msra.mxu0 0.0
  %1611 = vmatpush.msra.mxu0 0.0
  %1612 = vmatpush.msra.mxu0 0.0
  %1613 = vmatpush.msra.mxu0 %v1594
  %1614 = vmatmul.f32.gmra.mxu0 %v1596
  %v1615 = vpop.f32.mrf.mxu0
  %v1616 = vadd.f32 0.0, %v1615
  %1617 = vdwg.mxu0
  %v1618 = vadd.f32 %v1592, %v1616
  %v1619 = vld [vmem:[#allocation2] sm:$0x1]
  %v1621 = vperm.slane %v1619, 0
  %v1623 = vadd.f32 %v1618, %v1621
  %vm1624 = vcmask 1024
  %1625 = vst.msk [vmem:[%s17] sm:$0x3] %vm1624, %v1623
  // Predicated region
  $region70: #{hyena_graphsage_forward.2} parent=0 // pred_check
    _
  $region71: #{hyena_graphsage_forward.2} parent=0 // pred_check_branch
    %1627 = sbr.rel (0) target = $region73
  $region72: #{hyena_graphsage_forward.2} parent=0 // pred_region
    _
  $region73: #{hyena_graphsage_forward.2} parent=0 // pred_fallthru
    _
  // Predicated region
  $region74: #{hyena_graphsage_forward.2} parent=0 // pred_check
    _
  $region75: #{hyena_graphsage_forward.2} parent=0 // pred_check_branch
    %1629 = sbr.rel (0) target = $region77
  $region76: #{hyena_graphsage_forward.2} parent=0 // pred_region
    _
  $region77: #{hyena_graphsage_forward.2} parent=0 // pred_fallthru
    _

</llo_original>
